<compile_context>
chip_gen: v7x
topology: tpu7x:2x2x1
jax: 0.10.0
libtpu: 0.0.40
codegen_flags: <defaults>
</compile_context>

<pallas_src>
import functools

import jax
import jax.numpy as jnp
from jax.experimental import pallas as pl
from jax.experimental.pallas import tpu as pltpu


# ----------------------------------------------------------------------------
# Planning helpers (VMEM-budget / generation aware)
# ----------------------------------------------------------------------------
def _round_up(v, m):
    return ((v + m - 1) // m) * m


def _vmem_capacity_bytes():
    try:
        info = pltpu.get_tpu_info()
        cap = getattr(info, "vmem_capacity_bytes", None)
        if cap:
            return int(cap)
    except Exception:
        pass
    return 64 * 1024 * 1024  # conservative default (v7x per-core VMEM)


def _plan(B, F, E):
    """Pick batch/K tiling, w_pre residency, buffer depth and VMEM limit."""
    cap = _vmem_capacity_bytes()
    vmem_limit = int(cap * 0.75)          # ~48 MiB on v7x, ~96 MiB on v5e/v6e
    budget = int(vmem_limit * 0.85)       # working-set target with headroom

    # Batch tile: >= 2 batch blocks whenever possible so v7x's two
    # TensorCores both get work on the "parallel" axis.
    if B <= 8:
        Bt = 8
    else:
        Bt = min(128, _round_up(-(-B // 2), 8))
    nb = pl.cdiv(B, Bt)
    Bpad = nb * Bt

    Fp = _round_up(F, 128)                # lane-aligned reduction axis
    lane_E = _round_up(E, 128)            # lane padding of the E axis in VMEM

    acc_bytes = 2 * Bt * lane_E * 4
    small_bytes = 2 * 1024 * 1024         # small resident weights + slack

    # Resident w_pre if its (conservatively double-buffered) block fits.
    w_res_bytes = 2 * Fp * lane_E * 2
    resident = w_res_bytes <= budget // 2

    def fits(ft, x_bufs):
        x_bytes = x_bufs * Bt * ft * 4            # x tiles arrive as f32
        w_bytes = w_res_bytes if resident else 2 * ft * lane_E * 2
        return x_bytes + w_bytes + acc_bytes + small_bytes <= budget

    # K tile: largest multiple-of-128 divisor of Fp that fits the budget.
    q = Fp // 128
    Ft = 128
    for d in sorted((d for d in range(1, q + 1) if q % d == 0), reverse=True):
        if fits(d * 128, 2):
            Ft = d * 128
            break
    nk = Fp // Ft

    # Deeper x buffering only when there are several K steps and it fits.
    x_bufs = 3 if (nk >= 2 and fits(Ft, 3)) else 2
    return Bt, nb, Bpad, Fp, Ft, nk, resident, x_bufs, vmem_limit


# ----------------------------------------------------------------------------
# Kernel
# ----------------------------------------------------------------------------
def encoder_kernel(
    x_ref,                     # (Bt, Ft) f32 — one image's K-tile of this batch tile
    w_pre_ref,                 # (Fp, E) bf16 resident  OR  (Ft, E) bf16 streamed
    b_pre_ref,                 # (1, E) f32   (pretrained stand-in bias)
    w_fe_ref, b_fe_ref,        # (E, 10) f32, (1, 10) f32   (final_embedding)
    w1a_ref, w1b_ref, b1_ref,  # (10, 128), (10, 128), (1, 128) f32 (fc1 split)
    w2_ref, b2_ref,            # (128, OUT), (1, OUT) f32   (fc2)
    out_ref,                   # (Bt, OUT) f32
    acc_ref,                   # (2, Bt, E) f32 scratch — one accumulator per image
    *, nk, w_pre_resident,
):
    f32 = jnp.float32
    k = pl.program_id(1)       # reduction step over flat_features
    img = pl.program_id(2)     # image index (innermost grid axis)
    ft = x_ref.shape[1]

    # Fold the pretrained-layer bias into this image's accumulator init.
    @pl.when(k == 0)
    def _init():
        acc_ref[img] = jnp.broadcast_to(b_pre_ref[...], acc_ref.shape[1:])

    # w_pre tile: resident weight is sliced in-kernel; streamed comes pre-tiled.
    if w_pre_resident and nk > 1:
        start = pl.multiple_of(k * ft, ft)
        w_tile = w_pre_ref[pl.ds(start, ft), :]
    else:
        w_tile = w_pre_ref[...]

    # bf16 cast of the x tile in-kernel (hides under DMA); f32 accumulation.
    acc_ref[img] += jnp.dot(
        x_ref[...].astype(jnp.bfloat16), w_tile, preferred_element_type=f32)

    # Tiny epilogue runs once per batch tile, after both images are reduced.
    @pl.when((k == nk - 1) & (img == 1))
    def _tail():
        def emb(enc):  # relu(final_embedding(enc))
            return jnp.maximum(
                jnp.dot(enc, w_fe_ref[...], preferred_element_type=f32)
                + b_fe_ref[...], 0.0)

        e1, e2 = emb(acc_ref[0]), emb(acc_ref[1])            # [Bt, 10] each

        # cat((e1, e2), dim=1) @ W1 + b1  ==  e1 @ W1[:10] + e2 @ W1[10:] + b1
        h = jnp.maximum(
            jnp.dot(e1, w1a_ref[...], preferred_element_type=f32)
            + jnp.dot(e2, w1b_ref[...], preferred_element_type=f32)
            + b1_ref[...], 0.0)                              # [Bt, 128]

        logits = jnp.dot(h, w2_ref[...], preferred_element_type=f32) + b2_ref[...]

        # softmax over dim=1 (approx reciprocal -> EUP slot, essentially free)
        m = jnp.max(logits, axis=1, keepdims=True)
        e = jnp.exp(logits - m)
        inv = pl.reciprocal(jnp.sum(e, axis=1, keepdims=True), approx=True)
        out_ref[...] = e * inv


# ----------------------------------------------------------------------------
# Wrapper
# ----------------------------------------------------------------------------
def prepare_encoder_params(params):
    """One-time prep: bf16 cast + K-padding of w_pre, fc1 weight split.

    Done once per parameter set, NOT per forward call, so the forward never
    re-reads/re-writes the large weight in HBM just to change its dtype.
    """
    (w_pre, b_pre, w_fe, b_fe, w1, b1, w2, b2) = params
    F = w_pre.shape[0]
    Fp = _round_up(F, 128)
    w_pre_bf16 = w_pre.astype(jnp.bfloat16)
    if Fp != F:
        w_pre_bf16 = jnp.pad(w_pre_bf16, ((0, Fp - F), (0, 0)))
    return (w_pre_bf16, b_pre, w_fe, b_fe, w1[:10], w1[10:], b1, w2, b2)


def encoder_forward(x, kparams):
    """x: [B, 2, C, H, W] float32 (two NCHW images per sample, as in PyTorch)."""
    B = x.shape[0]
    F = x.shape[2] * x.shape[3] * x.shape[4]
    (w_pre, b_pre, w_fe, b_fe, w1a, w1b, b1, w2, b2) = kparams
    E = w_pre.shape[1]
    out_dim = w2.shape[1]

    Bt, nb, Bpad, Fp, Ft, nk, resident, x_bufs, vmem_limit = _plan(B, F, E)
    assert w_pre.shape[0] == Fp, "params not prepared for this input shape"

    # Free reshape: no concat, no dtype copy of x.
    x2d = x.reshape(B, 2, F)
    if Fp != F:
        # TODO(synk): rare copy — only when flat_features isn't a multiple of 128.
        x2d = jnp.pad(x2d, ((0, 0), (0, 0), (0, Fp - F)))
    x2d = x2d.reshape(B, 2 * Fp)
    if Bpad != B:
        # Only copies when B isn't a multiple of the batch tile.
        x2d = jnp.pad(x2d, ((0, Bpad - B), (0, 0)))

    wmap = lambda b, k, i: (0, 0)  # small weights stay resident across the grid

    x_index_map = lambda b, k, i: (b, i * nk + k)  # image i's k-th K-tile
    if x_bufs > 2:
        x_spec = pl.BlockSpec((Bt, Ft), x_index_map,
                              pipeline_mode=pl.Buffered(x_bufs))
    else:
        x_spec = pl.BlockSpec((Bt, Ft), x_index_map)

    if resident:
        w_pre_spec = pl.BlockSpec((Fp, E), wmap)             # fetched once, resident
    else:
        w_pre_spec = pl.BlockSpec((Ft, E), lambda b, k, i: (k, 0))

    grid_spec = pltpu.PrefetchScalarGridSpec(
        num_scalar_prefetch=0,
        grid=(nb, nk, 2),  # batch (parallel), flat_features reduction, image
        in_specs=[
            x_spec,                                          # x
            w_pre_spec,                                      # w_pre (bf16)
            pl.BlockSpec((1, E), wmap),                      # b_pre
            pl.BlockSpec((E, 10), wmap),                     # w_fe
            pl.BlockSpec((1, 10), wmap),                     # b_fe
            pl.BlockSpec((10, 128), wmap),                   # w1a
            pl.BlockSpec((10, 128), wmap),                   # w1b
            pl.BlockSpec((1, 128), wmap),                    # b1
            pl.BlockSpec((128, out_dim), wmap),              # w2
            pl.BlockSpec((1, out_dim), wmap),                # b2
        ],
        out_specs=pl.BlockSpec((Bt, out_dim), lambda b, k, i: (b, 0)),
        scratch_shapes=[pltpu.VMEM((2, Bt, E), jnp.float32)],
    )

    out = pl.pallas_call(
        functools.partial(encoder_kernel, nk=nk, w_pre_resident=resident),
        out_shape=jax.ShapeDtypeStruct((Bpad, out_dim), jnp.float32),
        grid_spec=grid_spec,
        compiler_params=pltpu.CompilerParams(
            dimension_semantics=("parallel", "arbitrary", "arbitrary"),
            vmem_limit_bytes=vmem_limit,
        ),
    )(x2d, w_pre, b_pre, w_fe, b_fe, w1a, w1b, b1, w2, b2)

    return out[:B]


# ----------------------------------------------------------------------------
# Reference (pure JAX, f32) and parameter init
# ----------------------------------------------------------------------------
def encoder_reference(x, params):
    (w_pre, b_pre, w_fe, b_fe, w1, b1, w2, b2) = params
    B = x.shape[0]
    F = x.shape[2] * x.shape[3] * x.shape[4]

    def single(img):
        enc = img @ w_pre + b_pre
        return jax.nn.relu(enc @ w_fe + b_fe)

    e1 = single(x[:, 0].reshape(B, F))
    e2 = single(x[:, 1].reshape(B, F))
    h = jax.nn.relu(jnp.concatenate([e1, e2], axis=1) @ w1 + b1)
    return jax.nn.softmax(h @ w2 + b2, axis=1)


def init_params(key, flat_features, encoding_dimensions, output_dim):
    """Deterministic synthetic parameters (PyTorch Linear -> (in, out) layout)."""
    ks = jax.random.split(key, 8)
    scale = 0.05
    w_pre = scale * jax.random.normal(ks[0], (flat_features, encoding_dimensions), jnp.float32)
    b_pre = scale * jax.random.normal(ks[1], (1, encoding_dimensions), jnp.float32)
    w_fe  = scale * jax.random.normal(ks[2], (encoding_dimensions, 10), jnp.float32)
    b_fe  = scale * jax.random.normal(ks[3], (1, 10), jnp.float32)
    w1    = scale * jax.random.normal(ks[4], (20, 128), jnp.float32)
    b1    = scale * jax.random.normal(ks[5], (1, 128), jnp.float32)
    w2    = scale * jax.random.normal(ks[6], (128, output_dim), jnp.float32)
    b2    = scale * jax.random.normal(ks[7], (1, output_dim), jnp.float32)
    return (w_pre, b_pre, w_fe, b_fe, w1, b1, w2, b2)


if __name__ == "__main__":
    key = jax.random.PRNGKey(0)
    k_x, k_p = jax.random.split(key)

    B, C, H, W = 2, 4, 16, 16
    encoding_dimensions = 32
    output_dim = 8
    flat_features = C * H * W

    x = jax.random.normal(k_x, (B, 2, C, H, W), jnp.float32)
    params = init_params(k_p, flat_features, encoding_dimensions, output_dim)
    kparams = prepare_encoder_params(params)     # one-time bf16 cast / split

    out = jax.block_until_ready(encoder_forward(x, kparams))
    ref = jax.block_until_ready(encoder_reference(x, params))

    assert out.shape == (B, output_dim)
    # softmax rows must sum to ~1 (approx reciprocal -> relaxed tolerance)
    assert jnp.allclose(jnp.sum(out, axis=1), 1.0, atol=5e-3)
    # matches the f32 reference up to bf16 drift on the first matmul
    assert jnp.allclose(out, ref, atol=1e-2, rtol=1e-2)

    print("KERNEL_OK")
</pallas_src>

<mosaic_0001>
module attributes {stable_mosaic.version = 11 : i64} {
  func.func @encoder_kernel(%arg0: i32, %arg1: i32, %arg2: i32, %arg3: memref<8x1024xf32, #tpu.memory_space<vmem>>, %arg4: memref<1024x32xbf16, #tpu.memory_space<vmem>>, %arg5: memref<1x32xf32, #tpu.memory_space<vmem>>, %arg6: memref<32x10xf32, #tpu.memory_space<vmem>>, %arg7: memref<1x10xf32, #tpu.memory_space<vmem>>, %arg8: memref<10x128xf32, #tpu.memory_space<vmem>>, %arg9: memref<10x128xf32, #tpu.memory_space<vmem>>, %arg10: memref<1x128xf32, #tpu.memory_space<vmem>>, %arg11: memref<128x8xf32, #tpu.memory_space<vmem>>, %arg12: memref<1x8xf32, #tpu.memory_space<vmem>>, %arg13: memref<8x8xf32, #tpu.memory_space<vmem>>, %arg14: memref<2x8x32xf32, #tpu.memory_space<vmem>>) attributes {dimension_semantics = [#tpu.dimension_semantics<parallel>, #tpu.dimension_semantics<arbitrary>, #tpu.dimension_semantics<arbitrary>], iteration_bounds = array<i64: 1, 1, 2>, scalar_prefetch = 0 : i64, scratch_operands = 1 : i64, tpu.core_type = #tpu.core_type<tc>, window_params = [{transform_indices = @transform_0, window_bounds = array<i64: 8, 1024>}, {pipeline_mode = #tpu.pipeline_mode<synchronous>, transform_indices = @transform_1, window_bounds = array<i64: 1024, 32>}, {pipeline_mode = #tpu.pipeline_mode<synchronous>, transform_indices = @transform_2, window_bounds = array<i64: 1, 32>}, {pipeline_mode = #tpu.pipeline_mode<synchronous>, transform_indices = @transform_3, window_bounds = array<i64: 32, 10>}, {pipeline_mode = #tpu.pipeline_mode<synchronous>, transform_indices = @transform_4, window_bounds = array<i64: 1, 10>}, {pipeline_mode = #tpu.pipeline_mode<synchronous>, transform_indices = @transform_5, window_bounds = array<i64: 10, 128>}, {pipeline_mode = #tpu.pipeline_mode<synchronous>, transform_indices = @transform_6, window_bounds = array<i64: 10, 128>}, {pipeline_mode = #tpu.pipeline_mode<synchronous>, transform_indices = @transform_7, window_bounds = array<i64: 1, 128>}, {pipeline_mode = #tpu.pipeline_mode<synchronous>, transform_indices = @transform_8, window_bounds = array<i64: 128, 8>}, {pipeline_mode = #tpu.pipeline_mode<synchronous>, transform_indices = @transform_9, window_bounds = array<i64: 1, 8>}, {transform_indices = @transform_10, window_bounds = array<i64: 8, 8>}]} {
    %c0_i32 = arith.constant 0 : i32
    %0 = arith.cmpi eq, %arg1, %c0_i32 : i32
    %1 = arith.extui %0 : i1 to i32
    %c0_i32_0 = arith.constant 0 : i32
    %2 = arith.cmpi ne, %1, %c0_i32_0 : i32
    scf.if %2 {
      %c0_10 = arith.constant 0 : index
      %c0_11 = arith.constant 0 : index
      %20 = vector.load %arg5[%c0_10, %c0_11] : memref<1x32xf32, #tpu.memory_space<vmem>>, vector<1x32xf32>
      %21 = vector.shape_cast %20 : vector<1x32xf32> to vector<1x32xf32>
      %22 = vector.broadcast %21 : vector<1x32xf32> to vector<8x32xf32>
      %23 = arith.index_cast %arg2 : i32 to index
      %c0_12 = arith.constant 0 : index
      %c0_13 = arith.constant 0 : index
      %24 = vector.load %arg14[%23, %c0_12, %c0_13] : memref<2x8x32xf32, #tpu.memory_space<vmem>>, vector<1x8x32xf32>
      %25 = vector.shape_cast %24 : vector<1x8x32xf32> to vector<8x32xf32>
      %26 = vector.shape_cast %22 : vector<8x32xf32> to vector<1x8x32xf32>
      tpu.vector_store %arg14[%23, %c0_12, %c0_13], %26 {strides = array<i32>} : memref<2x8x32xf32, #tpu.memory_space<vmem>>, vector<1x8x32xf32>,
    } else {
    }
    %c0 = arith.constant 0 : index
    %c0_1 = arith.constant 0 : index
    %3 = vector.load %arg4[%c0, %c0_1] : memref<1024x32xbf16, #tpu.memory_space<vmem>>, vector<1024x32xbf16>
    %4 = arith.index_cast %arg2 : i32 to index
    %c0_2 = arith.constant 0 : index
    %c0_3 = arith.constant 0 : index
    %5 = vector.load %arg14[%4, %c0_2, %c0_3] : memref<2x8x32xf32, #tpu.memory_space<vmem>>, vector<1x8x32xf32>
    %6 = vector.shape_cast %5 : vector<1x8x32xf32> to vector<8x32xf32>
    %c0_4 = arith.constant 0 : index
    %c0_5 = arith.constant 0 : index
    %7 = vector.load %arg3[%c0_4, %c0_5] : memref<8x1024xf32, #tpu.memory_space<vmem>>, vector<8x1024xf32>
    %8 = arith.truncf %7 : vector<8x1024xf32> to vector<8x1024xbf16>
    %cst = arith.constant dense<0.000000e+00> : vector<8x32xf32>
    %9 = tpu.matmul %8, %3, %cst {dimension_numbers = #tpu.dot_dimension_numbers<[1], [0], [0], [1], [0, 0, 1, 1], [], []>} : vector<8x1024xbf16>, vector<1024x32xbf16>, vector<8x32xf32> -> vector<8x32xf32>
    %10 = arith.addf %6, %9 : vector<8x32xf32>
    %11 = arith.index_cast %arg2 : i32 to index
    %c0_6 = arith.constant 0 : index
    %c0_7 = arith.constant 0 : index
    %12 = vector.load %arg14[%11, %c0_6, %c0_7] : memref<2x8x32xf32, #tpu.memory_space<vmem>>, vector<1x8x32xf32>
    %13 = vector.shape_cast %12 : vector<1x8x32xf32> to vector<8x32xf32>
    %14 = vector.shape_cast %10 : vector<8x32xf32> to vector<1x8x32xf32>
    tpu.vector_store %arg14[%11, %c0_6, %c0_7], %14 {strides = array<i32>} : memref<2x8x32xf32, #tpu.memory_space<vmem>>, vector<1x8x32xf32>,
    %c0_i32_8 = arith.constant 0 : i32
    %15 = arith.cmpi eq, %arg1, %c0_i32_8 : i32
    %c1_i32 = arith.constant 1 : i32
    %16 = arith.cmpi eq, %arg2, %c1_i32 : i32
    %17 = arith.andi %15, %16 : i1
    %18 = arith.extui %17 : i1 to i32
    %c0_i32_9 = arith.constant 0 : i32
    %19 = arith.cmpi ne, %18, %c0_i32_9 : i32
    scf.if %19 {
      %c0_10 = arith.constant 0 : index
      %c0_11 = arith.constant 0 : index
      %c0_12 = arith.constant 0 : index
      %20 = vector.load %arg14[%c0_10, %c0_11, %c0_12] : memref<2x8x32xf32, #tpu.memory_space<vmem>>, vector<1x8x32xf32>
      %21 = vector.shape_cast %20 : vector<1x8x32xf32> to vector<8x32xf32>
      %c0_13 = arith.constant 0 : index
      %c0_14 = arith.constant 0 : index
      %22 = vector.load %arg6[%c0_13, %c0_14] : memref<32x10xf32, #tpu.memory_space<vmem>>, vector<32x10xf32>
      %cst_15 = arith.constant dense<0.000000e+00> : vector<8x10xf32>
      %23 = tpu.matmul %21, %22, %cst_15 {dimension_numbers = #tpu.dot_dimension_numbers<[1], [0], [0], [1], [0, 0, 1, 1], [], []>} : vector<8x32xf32>, vector<32x10xf32>, vector<8x10xf32> -> vector<8x10xf32>
      %c0_16 = arith.constant 0 : index
      %c0_17 = arith.constant 0 : index
      %24 = vector.load %arg7[%c0_16, %c0_17] : memref<1x10xf32, #tpu.memory_space<vmem>>, vector<1x10xf32>
      %25 = vector.broadcast %24 : vector<1x10xf32> to vector<8x10xf32>
      %26 = arith.addf %23, %25 : vector<8x10xf32>
      %cst_18 = arith.constant 0.000000e+00 : f32
      %27 = vector.broadcast %cst_18 : f32 to vector<8x10xf32>
      %28 = arith.maximumf %26, %27 : vector<8x10xf32>
      %c1 = arith.constant 1 : index
      %c0_19 = arith.constant 0 : index
      %c0_20 = arith.constant 0 : index
      %29 = vector.load %arg14[%c1, %c0_19, %c0_20] : memref<2x8x32xf32, #tpu.memory_space<vmem>>, vector<1x8x32xf32>
      %30 = vector.shape_cast %29 : vector<1x8x32xf32> to vector<8x32xf32>
      %c0_21 = arith.constant 0 : index
      %c0_22 = arith.constant 0 : index
      %31 = vector.load %arg6[%c0_21, %c0_22] : memref<32x10xf32, #tpu.memory_space<vmem>>, vector<32x10xf32>
      %cst_23 = arith.constant dense<0.000000e+00> : vector<8x10xf32>
      %32 = tpu.matmul %30, %31, %cst_23 {dimension_numbers = #tpu.dot_dimension_numbers<[1], [0], [0], [1], [0, 0, 1, 1], [], []>} : vector<8x32xf32>, vector<32x10xf32>, vector<8x10xf32> -> vector<8x10xf32>
      %c0_24 = arith.constant 0 : index
      %c0_25 = arith.constant 0 : index
      %33 = vector.load %arg7[%c0_24, %c0_25] : memref<1x10xf32, #tpu.memory_space<vmem>>, vector<1x10xf32>
      %34 = vector.broadcast %33 : vector<1x10xf32> to vector<8x10xf32>
      %35 = arith.addf %32, %34 : vector<8x10xf32>
      %cst_26 = arith.constant 0.000000e+00 : f32
      %36 = vector.broadcast %cst_26 : f32 to vector<8x10xf32>
      %37 = arith.maximumf %35, %36 : vector<8x10xf32>
      %c0_27 = arith.constant 0 : index
      %c0_28 = arith.constant 0 : index
      %38 = vector.load %arg8[%c0_27, %c0_28] : memref<10x128xf32, #tpu.memory_space<vmem>>, vector<10x128xf32>
      %cst_29 = arith.constant dense<0.000000e+00> : vector<8x128xf32>
      %39 = tpu.matmul %28, %38, %cst_29 {dimension_numbers = #tpu.dot_dimension_numbers<[1], [0], [0], [1], [0, 0, 1, 1], [], []>} : vector<8x10xf32>, vector<10x128xf32>, vector<8x128xf32> -> vector<8x128xf32>
      %c0_30 = arith.constant 0 : index
      %c0_31 = arith.constant 0 : index
      %40 = vector.load %arg9[%c0_30, %c0_31] : memref<10x128xf32, #tpu.memory_space<vmem>>, vector<10x128xf32>
      %cst_32 = arith.constant dense<0.000000e+00> : vector<8x128xf32>
      %41 = tpu.matmul %37, %40, %cst_32 {dimension_numbers = #tpu.dot_dimension_numbers<[1], [0], [0], [1], [0, 0, 1, 1], [], []>} : vector<8x10xf32>, vector<10x128xf32>, vector<8x128xf32> -> vector<8x128xf32>
      %42 = arith.addf %39, %41 : vector<8x128xf32>
      %c0_33 = arith.constant 0 : index
      %c0_34 = arith.constant 0 : index
      %43 = vector.load %arg10[%c0_33, %c0_34] : memref<1x128xf32, #tpu.memory_space<vmem>>, vector<1x128xf32>
      %44 = vector.broadcast %43 : vector<1x128xf32> to vector<8x128xf32>
      %45 = arith.addf %42, %44 : vector<8x128xf32>
      %cst_35 = arith.constant 0.000000e+00 : f32
      %46 = vector.broadcast %cst_35 : f32 to vector<8x128xf32>
      %47 = arith.maximumf %45, %46 : vector<8x128xf32>
      %c0_36 = arith.constant 0 : index
      %c0_37 = arith.constant 0 : index
      %48 = vector.load %arg11[%c0_36, %c0_37] : memref<128x8xf32, #tpu.memory_space<vmem>>, vector<128x8xf32>
      %cst_38 = arith.constant dense<0.000000e+00> : vector<8x8xf32>
      %49 = tpu.matmul %47, %48, %cst_38 {dimension_numbers = #tpu.dot_dimension_numbers<[1], [0], [0], [1], [0, 0, 1, 1], [], []>} : vector<8x128xf32>, vector<128x8xf32>, vector<8x8xf32> -> vector<8x8xf32>
      %c0_39 = arith.constant 0 : index
      %c0_40 = arith.constant 0 : index
      %50 = vector.load %arg12[%c0_39, %c0_40] : memref<1x8xf32, #tpu.memory_space<vmem>>, vector<1x8xf32>
      %51 = vector.broadcast %50 : vector<1x8xf32> to vector<8x8xf32>
      %52 = arith.addf %49, %51 : vector<8x8xf32>
      %cst_41 = arith.constant dense<0xFF800000> : vector<8xf32>
      %53 = vector.multi_reduction <maximumf>, %52, %cst_41 [1] : vector<8x8xf32> to vector<8xf32>
      %54 = vector.shape_cast %53 : vector<8xf32> to vector<8x1xf32>
      %55 = vector.broadcast %54 : vector<8x1xf32> to vector<8x8xf32>
      %56 = arith.subf %52, %55 : vector<8x8xf32>
      %57 = math.exp %56 : vector<8x8xf32>
      %cst_42 = arith.constant dense<0.000000e+00> : vector<8xf32>
      %58 = vector.multi_reduction <add>, %57, %cst_42 [1] : vector<8x8xf32> to vector<8xf32>
      %59 = vector.shape_cast %58 : vector<8xf32> to vector<8x1xf32>
      %60 = tpu.reciprocal %59 {approx = true} : vector<8x1xf32> -> vector<8x1xf32>
      %61 = vector.broadcast %60 : vector<8x1xf32> to vector<8x8xf32>
      %62 = arith.mulf %57, %61 : vector<8x8xf32>
      %c0_43 = arith.constant 0 : index
      %c0_44 = arith.constant 0 : index
      %63 = vector.load %arg13[%c0_43, %c0_44] : memref<8x8xf32, #tpu.memory_space<vmem>>, vector<8x8xf32>
      tpu.vector_store %arg13[%c0_43, %c0_44], %62 {strides = array<i32>} : memref<8x8xf32, #tpu.memory_space<vmem>>, vector<8x8xf32>,
    } else {
    }
    return
  }
  func.func @transform_0(%arg0: i32, %arg1: i32, %arg2: i32) -> (i32, i32) {
    %c1_i32 = arith.constant 1 : i32
    %0 = arith.muli %arg2, %c1_i32 : i32
    %1 = arith.addi %0, %arg1 : i32
    %c0_i32 = arith.constant 0 : i32
    return %arg0, %1 : i32, i32
  }
  func.func @transform_1(%arg0: i32, %arg1: i32, %arg2: i32) -> (i32, i32) {
    %c0_i32 = arith.constant 0 : i32
    %c0_i32_0 = arith.constant 0 : i32
    %c0_i32_1 = arith.constant 0 : i32
    return %c0_i32, %c0_i32_0 : i32, i32
  }
  func.func @transform_2(%arg0: i32, %arg1: i32, %arg2: i32) -> (i32, i32) {
    %c0_i32 = arith.constant 0 : i32
    %c0_i32_0 = arith.constant 0 : i32
    %c0_i32_1 = arith.constant 0 : i32
    return %c0_i32, %c0_i32_0 : i32, i32
  }
  func.func @transform_3(%arg0: i32, %arg1: i32, %arg2: i32) -> (i32, i32) {
    %c0_i32 = arith.constant 0 : i32
    %c0_i32_0 = arith.constant 0 : i32
    %c0_i32_1 = arith.constant 0 : i32
    return %c0_i32, %c0_i32_0 : i32, i32
  }
  func.func @transform_4(%arg0: i32, %arg1: i32, %arg2: i32) -> (i32, i32) {
    %c0_i32 = arith.constant 0 : i32
    %c0_i32_0 = arith.constant 0 : i32
    %c0_i32_1 = arith.constant 0 : i32
    return %c0_i32, %c0_i32_0 : i32, i32
  }
  func.func @transform_5(%arg0: i32, %arg1: i32, %arg2: i32) -> (i32, i32) {
    %c0_i32 = arith.constant 0 : i32
    %c0_i32_0 = arith.constant 0 : i32
    %c0_i32_1 = arith.constant 0 : i32
    return %c0_i32, %c0_i32_0 : i32, i32
  }
  func.func @transform_6(%arg0: i32, %arg1: i32, %arg2: i32) -> (i32, i32) {
    %c0_i32 = arith.constant 0 : i32
    %c0_i32_0 = arith.constant 0 : i32
    %c0_i32_1 = arith.constant 0 : i32
    return %c0_i32, %c0_i32_0 : i32, i32
  }
  func.func @transform_7(%arg0: i32, %arg1: i32, %arg2: i32) -> (i32, i32) {
    %c0_i32 = arith.constant 0 : i32
    %c0_i32_0 = arith.constant 0 : i32
    %c0_i32_1 = arith.constant 0 : i32
    return %c0_i32, %c0_i32_0 : i32, i32
  }
  func.func @transform_8(%arg0: i32, %arg1: i32, %arg2: i32) -> (i32, i32) {
    %c0_i32 = arith.constant 0 : i32
    %c0_i32_0 = arith.constant 0 : i32
    %c0_i32_1 = arith.constant 0 : i32
    return %c0_i32, %c0_i32_0 : i32, i32
  }
  func.func @transform_9(%arg0: i32, %arg1: i32, %arg2: i32) -> (i32, i32) {
    %c0_i32 = arith.constant 0 : i32
    %c0_i32_0 = arith.constant 0 : i32
    %c0_i32_1 = arith.constant 0 : i32
    return %c0_i32, %c0_i32_0 : i32, i32
  }
  func.func @transform_10(%arg0: i32, %arg1: i32, %arg2: i32) -> (i32, i32) {
    %c0_i32 = arith.constant 0 : i32
    %c0_i32_0 = arith.constant 0 : i32
    return %arg0, %c0_i32 : i32, i32
  }
}

</mosaic_0001>

<llo_original>
// kernel: tpu_custom_call.1
$region0: #{tpu_custom_call.1}
  #allocation0 [shape = 'u32[]', space=smem, size = 0x4, offset = 0x4, fixed_abs, tag = 'smem constant byte address 0x4 - core index']
  #allocation1 [shape = 'u32[144,128]{1,0:T(1,128)}', space=vmem, size = 0x12000, scoped, tag = 'internal scratch']
  #allocation2 [shape = 'f32[2,8,32]{2,1,0:T(8,128)}', space=vmem, size = 0x2000, scoped, tag = 'scratch operand']
  %s0 = inlined_call_operand.vmem [shape: f32[8,2048], index: 0, kind: input, shape index: {}]
  %s1 = inlined_call_operand.vmem [shape: bf16[1024,32], index: 1, kind: input, shape index: {}]
  %s2 = inlined_call_operand.vmem [shape: f32[1,32], index: 2, kind: input, shape index: {}]
  %s3 = inlined_call_operand.vmem [shape: f32[32,10], index: 3, kind: input, shape index: {}]
  %s4 = inlined_call_operand.vmem [shape: f32[1,10], index: 4, kind: input, shape index: {}]
  %s5 = inlined_call_operand.vmem [shape: f32[10,128], index: 5, kind: input, shape index: {}]
  %s6 = inlined_call_operand.vmem [shape: f32[10,128], index: 6, kind: input, shape index: {}]
  %s7 = inlined_call_operand.vmem [shape: f32[1,128], index: 7, kind: input, shape index: {}]
  %s8 = inlined_call_operand.vmem [shape: f32[128,8], index: 8, kind: input, shape index: {}]
  %s9 = inlined_call_operand.vmem [shape: f32[1,8], index: 9, kind: input, shape index: {}]
  %s10 = inlined_call_operand.hbm [shape: f32[8,8], index: 10, kind: output, shape index: {}]
  %s11 = sld [smem:[#allocation0]]
  $region81: #{tpu_custom_call.1} parent=0
    _
  %s13 = ssub.s32 1, %s11
  %s14 = scalar_select 0, %s13, %s11
  $region1: #{tpu_custom_call.1} parent=0
    #allocation3 [shape = 'u8[4096]{0}', space=vmem, size = 0x1000, scoped, tag = 'output window, operand 0, single buffered']
    #allocation4 [shape = 's32[2]{0}', space=sflag, size = 0x8, scoped, tag = 'scoped memory for tpu_custom_call.1']
    %15 = vsyncpa [#allocation4], 0
    loop: start=0, step=1, limit=4
    $region2: #{tpu_custom_call.1} parent=1 // loop_pre_header
      _
    $region3: #{tpu_custom_call.1} parent=1 // loop_header
      %s17 = sphi 0, %s21
      %p18 = scmp.ge.s32.totalorder %s17, 4
      %s24 = sphi 0, %s43
      %s25 = sphi 0, %s39
      %s26 = sphi 0, %s35
      %s27 = sphi 0, %s24
      %s28 = sphi 0, %s25
      %s29 = sphi 0, %s26
      %s30 = sphi 0, %s27
      %s31 = sphi 0, %s28
      %s32 = sphi 0, %s29
      %s50 = sphi 0, %s52
      %s53 = sphi 0, %s50
      %s54 = sphi 0, %s53
      %s70 = sphi 0, %s54
      %s74 = sphi 0, %s74
      %s76 = sphi 0, %s74
      %s77 = sphi 0, %s76
      %s91 = sphi 0, %s77
      %s95 = sphi 0, %s95
      %s97 = sphi 0, %s95
      %s98 = sphi 0, %s97
      %s112 = sphi 0, %s98
      %s116 = sphi 0, %s116
      %s118 = sphi 0, %s116
      %s119 = sphi 0, %s118
      %s133 = sphi 0, %s119
      %s137 = sphi 0, %s137
      %s139 = sphi 0, %s137
      %s140 = sphi 0, %s139
      %s154 = sphi 0, %s140
      %s158 = sphi 0, %s158
      %s160 = sphi 0, %s158
      %s161 = sphi 0, %s160
      %s175 = sphi 0, %s161
      %s179 = sphi 0, %s179
      %s181 = sphi 0, %s179
      %s182 = sphi 0, %s181
      %s196 = sphi 0, %s182
      %s200 = sphi 0, %s200
      %s202 = sphi 0, %s200
      %s203 = sphi 0, %s202
      %s217 = sphi 0, %s203
      %s221 = sphi 0, %s221
      %s223 = sphi 0, %s221
      %s224 = sphi 0, %s223
      %s238 = sphi 0, %s224
      %s242 = sphi 0, %s242
      %s244 = sphi 0, %s242
      %s245 = sphi 0, %s244
      %s259 = sphi 0, %s245
      %s265 = sphi 0, %s267
      %s268 = sphi 0, %s265
      %s269 = sphi 0, %s268
      %s285 = sphi 0, %s269
    $region4: #{tpu_custom_call.1} parent=1 // loop_header_branch
      %20 = sbr.rel (%p18) target = $region8
    $region5: #{tpu_custom_call.1} parent=1 // loop_body
      %s22 = ssub.s32 %s17, 1
      %s23 = ssub.s32 %s17, 2
      %s33 = sadd.s32 1, %s26
      %p34 = scmp.ge.s32.totalorder %s33, 2
      %s35 = scalar_select %p34, 0, %s33
      %s36 = sadd.s32 1, %s25
      %s37 = scalar_select %p34, %s36, %s25
      %p38 = scmp.ge.s32.totalorder %s37, 1
      %s39 = scalar_select %p38, 0, %s37
      %s40 = sadd.s32 1, %s24
      %s41 = scalar_select %p38, %s40, %s24
      %p42 = scmp.ge.s32.totalorder %s41, 1
      %s43 = scalar_select %p42, 0, %s41
      %s44 = sadd.s32 %s26, %s25
      %s45 = sadd.s32 %s35, %s39
      %s46 = ssub.s32 %s24, %s43
      %s47 = ssub.s32 %s44, %s45
      %s48 = sor.u32 %s46, %s47
      %p49 = scmp.eq.s32.totalorder %s48, 0
      %s51 = sadd.s32 %s50, 1
      %s52 = scalar_select %p49, %s50, %s51
      %p55 = pneg %p49
      %p56 = scmp.eq.s32.totalorder %s17, 1
      %p57 = por %p55, %p56
      %p58 = scmp.ne.s32.totalorder %s50, %s53
      %p59 = scmp.eq.s32.totalorder %s17, 0
      %p60 = por %p58, %p59
      %p61 = scmp.ne.s32.totalorder %s50, %s53
      %p62 = scmp.eq.s32.totalorder %s22, 1
      %p63 = por %p61, %p62
      %p64 = scmp.ne.s32.totalorder %s53, %s54
      %p65 = scmp.eq.s32.totalorder %s22, 0
      %p66 = por %p64, %p65
      %p67 = scmp.ne.s32.totalorder %s53, %s54
      %p68 = scmp.eq.s32.totalorder %s23, 1
      %p69 = por %p67, %p68
      %p71 = scmp.ne.s32.totalorder %s54, %s70
      %p72 = scmp.eq.s32.totalorder %s23, 0
      %p73 = por %p71, %p72
      %s75 = sadd.s32 %s74, 1
      %p78 = scmp.eq.s32.totalorder %s17, 1
      %p79 = scmp.ne.s32.totalorder %s74, %s76
      %p80 = scmp.eq.s32.totalorder %s17, 0
      %p81 = por %p79, %p80
      %p82 = scmp.ne.s32.totalorder %s74, %s76
      %p83 = scmp.eq.s32.totalorder %s22, 1
      %p84 = por %p82, %p83
      %p85 = scmp.ne.s32.totalorder %s76, %s77
      %p86 = scmp.eq.s32.totalorder %s22, 0
      %p87 = por %p85, %p86
      %p88 = scmp.ne.s32.totalorder %s76, %s77
      %p89 = scmp.eq.s32.totalorder %s23, 1
      %p90 = por %p88, %p89
      %p92 = scmp.ne.s32.totalorder %s77, %s91
      %p93 = scmp.eq.s32.totalorder %s23, 0
      %p94 = por %p92, %p93
      %s96 = sadd.s32 %s95, 1
      %p99 = scmp.eq.s32.totalorder %s17, 1
      %p100 = scmp.ne.s32.totalorder %s95, %s97
      %p101 = scmp.eq.s32.totalorder %s17, 0
      %p102 = por %p100, %p101
      %p103 = scmp.ne.s32.totalorder %s95, %s97
      %p104 = scmp.eq.s32.totalorder %s22, 1
      %p105 = por %p103, %p104
      %p106 = scmp.ne.s32.totalorder %s97, %s98
      %p107 = scmp.eq.s32.totalorder %s22, 0
      %p108 = por %p106, %p107
      %p109 = scmp.ne.s32.totalorder %s97, %s98
      %p110 = scmp.eq.s32.totalorder %s23, 1
      %p111 = por %p109, %p110
      %p113 = scmp.ne.s32.totalorder %s98, %s112
      %p114 = scmp.eq.s32.totalorder %s23, 0
      %p115 = por %p113, %p114
      %s117 = sadd.s32 %s116, 1
      %p120 = scmp.eq.s32.totalorder %s17, 1
      %p121 = scmp.ne.s32.totalorder %s116, %s118
      %p122 = scmp.eq.s32.totalorder %s17, 0
      %p123 = por %p121, %p122
      %p124 = scmp.ne.s32.totalorder %s116, %s118
      %p125 = scmp.eq.s32.totalorder %s22, 1
      %p126 = por %p124, %p125
      %p127 = scmp.ne.s32.totalorder %s118, %s119
      %p128 = scmp.eq.s32.totalorder %s22, 0
      %p129 = por %p127, %p128
      %p130 = scmp.ne.s32.totalorder %s118, %s119
      %p131 = scmp.eq.s32.totalorder %s23, 1
      %p132 = por %p130, %p131
      %p134 = scmp.ne.s32.totalorder %s119, %s133
      %p135 = scmp.eq.s32.totalorder %s23, 0
      %p136 = por %p134, %p135
      %s138 = sadd.s32 %s137, 1
      %p141 = scmp.eq.s32.totalorder %s17, 1
      %p142 = scmp.ne.s32.totalorder %s137, %s139
      %p143 = scmp.eq.s32.totalorder %s17, 0
      %p144 = por %p142, %p143
      %p145 = scmp.ne.s32.totalorder %s137, %s139
      %p146 = scmp.eq.s32.totalorder %s22, 1
      %p147 = por %p145, %p146
      %p148 = scmp.ne.s32.totalorder %s139, %s140
      %p149 = scmp.eq.s32.totalorder %s22, 0
      %p150 = por %p148, %p149
      %p151 = scmp.ne.s32.totalorder %s139, %s140
      %p152 = scmp.eq.s32.totalorder %s23, 1
      %p153 = por %p151, %p152
      %p155 = scmp.ne.s32.totalorder %s140, %s154
      %p156 = scmp.eq.s32.totalorder %s23, 0
      %p157 = por %p155, %p156
      %s159 = sadd.s32 %s158, 1
      %p162 = scmp.eq.s32.totalorder %s17, 1
      %p163 = scmp.ne.s32.totalorder %s158, %s160
      %p164 = scmp.eq.s32.totalorder %s17, 0
      %p165 = por %p163, %p164
      %p166 = scmp.ne.s32.totalorder %s158, %s160
      %p167 = scmp.eq.s32.totalorder %s22, 1
      %p168 = por %p166, %p167
      %p169 = scmp.ne.s32.totalorder %s160, %s161
      %p170 = scmp.eq.s32.totalorder %s22, 0
      %p171 = por %p169, %p170
      %p172 = scmp.ne.s32.totalorder %s160, %s161
      %p173 = scmp.eq.s32.totalorder %s23, 1
      %p174 = por %p172, %p173
      %p176 = scmp.ne.s32.totalorder %s161, %s175
      %p177 = scmp.eq.s32.totalorder %s23, 0
      %p178 = por %p176, %p177
      %s180 = sadd.s32 %s179, 1
      %p183 = scmp.eq.s32.totalorder %s17, 1
      %p184 = scmp.ne.s32.totalorder %s179, %s181
      %p185 = scmp.eq.s32.totalorder %s17, 0
      %p186 = por %p184, %p185
      %p187 = scmp.ne.s32.totalorder %s179, %s181
      %p188 = scmp.eq.s32.totalorder %s22, 1
      %p189 = por %p187, %p188
      %p190 = scmp.ne.s32.totalorder %s181, %s182
      %p191 = scmp.eq.s32.totalorder %s22, 0
      %p192 = por %p190, %p191
      %p193 = scmp.ne.s32.totalorder %s181, %s182
      %p194 = scmp.eq.s32.totalorder %s23, 1
      %p195 = por %p193, %p194
      %p197 = scmp.ne.s32.totalorder %s182, %s196
      %p198 = scmp.eq.s32.totalorder %s23, 0
      %p199 = por %p197, %p198
      %s201 = sadd.s32 %s200, 1
      %p204 = scmp.eq.s32.totalorder %s17, 1
      %p205 = scmp.ne.s32.totalorder %s200, %s202
      %p206 = scmp.eq.s32.totalorder %s17, 0
      %p207 = por %p205, %p206
      %p208 = scmp.ne.s32.totalorder %s200, %s202
      %p209 = scmp.eq.s32.totalorder %s22, 1
      %p210 = por %p208, %p209
      %p211 = scmp.ne.s32.totalorder %s202, %s203
      %p212 = scmp.eq.s32.totalorder %s22, 0
      %p213 = por %p211, %p212
      %p214 = scmp.ne.s32.totalorder %s202, %s203
      %p215 = scmp.eq.s32.totalorder %s23, 1
      %p216 = por %p214, %p215
      %p218 = scmp.ne.s32.totalorder %s203, %s217
      %p219 = scmp.eq.s32.totalorder %s23, 0
      %p220 = por %p218, %p219
      %s222 = sadd.s32 %s221, 1
      %p225 = scmp.eq.s32.totalorder %s17, 1
      %p226 = scmp.ne.s32.totalorder %s221, %s223
      %p227 = scmp.eq.s32.totalorder %s17, 0
      %p228 = por %p226, %p227
      %p229 = scmp.ne.s32.totalorder %s221, %s223
      %p230 = scmp.eq.s32.totalorder %s22, 1
      %p231 = por %p229, %p230
      %p232 = scmp.ne.s32.totalorder %s223, %s224
      %p233 = scmp.eq.s32.totalorder %s22, 0
      %p234 = por %p232, %p233
      %p235 = scmp.ne.s32.totalorder %s223, %s224
      %p236 = scmp.eq.s32.totalorder %s23, 1
      %p237 = por %p235, %p236
      %p239 = scmp.ne.s32.totalorder %s224, %s238
      %p240 = scmp.eq.s32.totalorder %s23, 0
      %p241 = por %p239, %p240
      %s243 = sadd.s32 %s242, 1
      %p246 = scmp.eq.s32.totalorder %s17, 1
      %p247 = scmp.ne.s32.totalorder %s242, %s244
      %p248 = scmp.eq.s32.totalorder %s17, 0
      %p249 = por %p247, %p248
      %p250 = scmp.ne.s32.totalorder %s242, %s244
      %p251 = scmp.eq.s32.totalorder %s22, 1
      %p252 = por %p250, %p251
      %p253 = scmp.ne.s32.totalorder %s244, %s245
      %p254 = scmp.eq.s32.totalorder %s22, 0
      %p255 = por %p253, %p254
      %p256 = scmp.ne.s32.totalorder %s244, %s245
      %p257 = scmp.eq.s32.totalorder %s23, 1
      %p258 = por %p256, %p257
      %p260 = scmp.ne.s32.totalorder %s245, %s259
      %p261 = scmp.eq.s32.totalorder %s23, 0
      %p262 = por %p260, %p261
      %s263 = ssub.s32 %s24, %s43
      %p264 = scmp.eq.s32.totalorder %s263, 0
      %s266 = sadd.s32 %s265, 1
      %s267 = scalar_select %p264, %s265, %s266
      %p270 = pneg %p264
      %p271 = scmp.eq.s32.totalorder %s17, 1
      %p272 = por %p270, %p271
      %p273 = scmp.ne.s32.totalorder %s265, %s268
      %p274 = scmp.eq.s32.totalorder %s17, 0
      %p275 = por %p273, %p274
      %p276 = scmp.ne.s32.totalorder %s265, %s268
      %p277 = scmp.eq.s32.totalorder %s22, 1
      %p278 = por %p276, %p277
      %p279 = scmp.ne.s32.totalorder %s268, %s269
      %p280 = scmp.eq.s32.totalorder %s22, 0
      %p281 = por %p279, %p280
      %p282 = scmp.ne.s32.totalorder %s268, %s269
      %p283 = scmp.eq.s32.totalorder %s23, 1
      %p284 = por %p282, %p283
      %p286 = scmp.ne.s32.totalorder %s269, %s285
      %p287 = scmp.eq.s32.totalorder %s23, 0
      %p288 = por %p286, %p287
      %p289 = scmp.le.s32.totalorder 1, %s17
      %p290 = scmp.lt.s32.totalorder %s17, 3
      %p291 = pnand %p289, %p290
      %p292 = pneg %p291
      // Predicated region
      $region9: #{tpu_custom_call.1} parent=5 // pred_check
        _
      $region10: #{tpu_custom_call.1} parent=5 // pred_check_branch
        %294 = sbr.rel (%p291) target = $region12
      $region11: #{tpu_custom_call.1} parent=5 // pred_region
        %s295 = ssub.s32 %s17, 1
        // Predicated region
        $region13: #{tpu_custom_call.1} parent=11 // pred_check
          %p296 = pneg %p87
        $region14: #{tpu_custom_call.1} parent=11 // pred_check_branch
          %298 = sbr.rel (%p296) target = $region16
        $region15: #{tpu_custom_call.1} parent=11 // pred_region
          _
        $region16: #{tpu_custom_call.1} parent=11 // pred_fallthru
          _
        // Predicated region
        $region17: #{tpu_custom_call.1} parent=11 // pred_check
          %p299 = pneg %p108
        $region18: #{tpu_custom_call.1} parent=11 // pred_check_branch
          %301 = sbr.rel (%p299) target = $region20
        $region19: #{tpu_custom_call.1} parent=11 // pred_region
          _
        $region20: #{tpu_custom_call.1} parent=11 // pred_fallthru
          _
        // Predicated region
        $region21: #{tpu_custom_call.1} parent=11 // pred_check
          %p302 = pneg %p129
        $region22: #{tpu_custom_call.1} parent=11 // pred_check_branch
          %304 = sbr.rel (%p302) target = $region24
        $region23: #{tpu_custom_call.1} parent=11 // pred_region
          _
        $region24: #{tpu_custom_call.1} parent=11 // pred_fallthru
          _
        // Predicated region
        $region25: #{tpu_custom_call.1} parent=11 // pred_check
          %p305 = pneg %p150
        $region26: #{tpu_custom_call.1} parent=11 // pred_check_branch
          %307 = sbr.rel (%p305) target = $region28
        $region27: #{tpu_custom_call.1} parent=11 // pred_region
          _
        $region28: #{tpu_custom_call.1} parent=11 // pred_fallthru
          _
        // Predicated region
        $region29: #{tpu_custom_call.1} parent=11 // pred_check
          %p308 = pneg %p171
        $region30: #{tpu_custom_call.1} parent=11 // pred_check_branch
          %310 = sbr.rel (%p308) target = $region32
        $region31: #{tpu_custom_call.1} parent=11 // pred_region
          _
        $region32: #{tpu_custom_call.1} parent=11 // pred_fallthru
          _
        // Predicated region
        $region33: #{tpu_custom_call.1} parent=11 // pred_check
          %p311 = pneg %p192
        $region34: #{tpu_custom_call.1} parent=11 // pred_check_branch
          %313 = sbr.rel (%p311) target = $region36
        $region35: #{tpu_custom_call.1} parent=11 // pred_region
          _
        $region36: #{tpu_custom_call.1} parent=11 // pred_fallthru
          _
        // Predicated region
        $region37: #{tpu_custom_call.1} parent=11 // pred_check
          %p314 = pneg %p213
        $region38: #{tpu_custom_call.1} parent=11 // pred_check_branch
          %316 = sbr.rel (%p314) target = $region40
        $region39: #{tpu_custom_call.1} parent=11 // pred_region
          _
        $region40: #{tpu_custom_call.1} parent=11 // pred_fallthru
          _
        // Predicated region
        $region41: #{tpu_custom_call.1} parent=11 // pred_check
          %p317 = pneg %p234
        $region42: #{tpu_custom_call.1} parent=11 // pred_check_branch
          %319 = sbr.rel (%p317) target = $region44
        $region43: #{tpu_custom_call.1} parent=11 // pred_region
          _
        $region44: #{tpu_custom_call.1} parent=11 // pred_fallthru
          _
        // Predicated region
        $region45: #{tpu_custom_call.1} parent=11 // pred_check
          %p320 = pneg %p255
        $region46: #{tpu_custom_call.1} parent=11 // pred_check_branch
          %322 = sbr.rel (%p320) target = $region48
        $region47: #{tpu_custom_call.1} parent=11 // pred_region
          _
        $region48: #{tpu_custom_call.1} parent=11 // pred_fallthru
          _
      $region12: #{tpu_custom_call.1} parent=5 // pred_fallthru
        _
      %p323 = scmp.lt.s32.totalorder %s17, 2
      // Predicated region
      $region49: #{tpu_custom_call.1} parent=5 // pred_check
        %p324 = pneg %p323
      $region50: #{tpu_custom_call.1} parent=5 // pred_check_branch
        %326 = sbr.rel (%p324) target = $region52
      $region51: #{tpu_custom_call.1} parent=5 // pred_region
        // Predicated region
        $region53: #{tpu_custom_call.1} parent=51 // pred_check
          %p327 = pneg %p60
        $region54: #{tpu_custom_call.1} parent=51 // pred_check_branch
          %329 = sbr.rel (%p327) target = $region56
        $region55: #{tpu_custom_call.1} parent=51 // pred_region
          %s330 = sadd.s32 %s26, %s25
          %s331 = smul.u32 8, %s330
          %p332 = scmp.lt.s32.totalorder %s24, 0
          %s333 = scalar_select %p332, %s24, 0
          %p334 = scmp.lt.s32.totalorder %s331, 15
          %s335 = scalar_select %p334, %s331, 15
          %s336 = smul.addr %s333, 16
          %s337 = sadd.s32 %s335, %s336
          %s338 = smul.addr %s337, 8
          %s339 = scalar_lea.vmem %s0, %s338
          %s340 = sadd.s32 %s26, %s25
          %s341 = smul.u32 8, %s340
        $region56: #{tpu_custom_call.1} parent=51 // pred_fallthru
          _
      $region52: #{tpu_custom_call.1} parent=5 // pred_fallthru
        _
      %p342 = scmp.le.s32.totalorder 1, %s17
      %p343 = scmp.lt.s32.totalorder %s17, 3
      %p344 = pnand %p342, %p343
      %p345 = pneg %p344
      // Predicated region
      $region57: #{tpu_custom_call.1} parent=5 // pred_check
        _
      $region58: #{tpu_custom_call.1} parent=5 // pred_check_branch
        %347 = sbr.rel (%p344) target = $region60
      $region59: #{tpu_custom_call.1} parent=5 // pred_region
        %s348 = ssub.s32 %s17, 1
        %s349 = sadd.s32 %s29, %s28
        %s350 = smul.u32 8, %s349
        %p351 = scmp.lt.s32.totalorder %s27, 0
        %s352 = scalar_select %p351, %s27, 0
        %p353 = scmp.lt.s32.totalorder %s350, 15
        %s354 = scalar_select %p353, %s350, 15
        %s355 = smul.addr %s352, 16
        %s356 = sadd.s32 %s354, %s355
        %s357 = smul.addr %s356, 8
        %s358 = scalar_lea.vmem %s0, %s357
        %p359 = pneg %p66
        %p360 = pneg %p63
        %p361 = pneg %p87
        %p362 = pneg %p84
        %p363 = pneg %p108
        %p364 = pneg %p105
        %p365 = pneg %p129
        %p366 = pneg %p126
        %p367 = pneg %p150
        %p368 = pneg %p147
        %p369 = pneg %p171
        %p370 = pneg %p168
        %p371 = pneg %p192
        %p372 = pneg %p189
        %p373 = pneg %p213
        %p374 = pneg %p210
        %p375 = pneg %p234
        %p376 = pneg %p231
        %p377 = pneg %p255
        %p378 = pneg %p252
        %p379 = pneg %p281
        %p380 = pneg %p278
        %s381 = sadd.s32 %s29, %s28
        %s382 = smul.u32 8, %s381
        %p383 = scmp.lt.s32.totalorder %s27, 0
        %s384 = scalar_select %p383, %s27, 0
        %p385 = scmp.lt.s32.totalorder %s382, 15
        %s386 = scalar_select %p385, %s382, 15
        %s387 = smul.addr %s384, 16
        %s388 = sadd.s32 %s386, %s387
        %s389 = smul.addr %s388, 8
        %s390 = scalar_lea.vmem %s0, %s389
        %s391 = sadd.s32 %s29, %s28
        %s392 = smul.u32 8, %s391
        %p394 = scmp.eq.s32.totalorder %s28, 0
        // Predicated region
        $region61: #{tpu_custom_call.1} parent=59 // pred_check
          %p395 = pneg %p394
        $region62: #{tpu_custom_call.1} parent=59 // pred_check_branch
          %397 = sbr.rel (%p395) target = $region64
        $region63: #{tpu_custom_call.1} parent=59 // pred_region
          %v398 = vld [vmem:[%s2] sm:$0x1]
          %v400 = vlaneseq
          %v401 = vshrl.u32 %v400, 7
          %v402 = vsub.s32 0, %v401
          %v403 = vrot.slane %v398, %v402
          %s405 = smul.u32 %s29, 8
          %s406 = scalar_lea.vmem [#allocation2], %s405
          %vm407 = vcmask 261120
          %408 = vst.msk [vmem:[%s406] sm:$0xff] %vm407, %v403
        $region64: #{tpu_custom_call.1} parent=59 // pred_fallthru
          _
        %v409 = vld [vmem:[%s1] sm:$0xf]
        %v410 = vld [vmem:[%s1 + $0x4] sm:$0xf]
        %v411 = vld [vmem:[%s1 + $0x8] sm:$0xf]
        %v412 = vld [vmem:[%s1 + $0xc] sm:$0xf]
        %v413 = vld [vmem:[%s1 + $0x10] sm:$0xf]
        %v414 = vld [vmem:[%s1 + $0x14] sm:$0xf]
        %v415 = vld [vmem:[%s1 + $0x18] sm:$0xf]
        %v416 = vld [vmem:[%s1 + $0x1c] sm:$0xf]
        %v417 = vld [vmem:[%s1 + $0x20] sm:$0xf]
        %v418 = vld [vmem:[%s1 + $0x24] sm:$0xf]
        %v419 = vld [vmem:[%s1 + $0x28] sm:$0xf]
        %v420 = vld [vmem:[%s1 + $0x2c] sm:$0xf]
        %v421 = vld [vmem:[%s1 + $0x30] sm:$0xf]
        %v422 = vld [vmem:[%s1 + $0x34] sm:$0xf]
        %v423 = vld [vmem:[%s1 + $0x38] sm:$0xf]
        %v424 = vld [vmem:[%s1 + $0x3c] sm:$0xf]
        %v425 = vld [vmem:[%s1 + $0x40] sm:$0xf]
        %v426 = vld [vmem:[%s1 + $0x44] sm:$0xf]
        %v427 = vld [vmem:[%s1 + $0x48] sm:$0xf]
        %v428 = vld [vmem:[%s1 + $0x4c] sm:$0xf]
        %v429 = vld [vmem:[%s1 + $0x50] sm:$0xf]
        %v430 = vld [vmem:[%s1 + $0x54] sm:$0xf]
        %v431 = vld [vmem:[%s1 + $0x58] sm:$0xf]
        %v432 = vld [vmem:[%s1 + $0x5c] sm:$0xf]
        %v433 = vld [vmem:[%s1 + $0x60] sm:$0xf]
        %v434 = vld [vmem:[%s1 + $0x64] sm:$0xf]
        %v435 = vld [vmem:[%s1 + $0x68] sm:$0xf]
        %v436 = vld [vmem:[%s1 + $0x6c] sm:$0xf]
        %v437 = vld [vmem:[%s1 + $0x70] sm:$0xf]
        %v438 = vld [vmem:[%s1 + $0x74] sm:$0xf]
        %v439 = vld [vmem:[%s1 + $0x78] sm:$0xf]
        %v440 = vld [vmem:[%s1 + $0x7c] sm:$0xf]
        %v441 = vld [vmem:[%s1 + $0x80] sm:$0xf]
        %v442 = vld [vmem:[%s1 + $0x84] sm:$0xf]
        %v443 = vld [vmem:[%s1 + $0x88] sm:$0xf]
        %v444 = vld [vmem:[%s1 + $0x8c] sm:$0xf]
        %v445 = vld [vmem:[%s1 + $0x90] sm:$0xf]
        %v446 = vld [vmem:[%s1 + $0x94] sm:$0xf]
        %v447 = vld [vmem:[%s1 + $0x98] sm:$0xf]
        %v448 = vld [vmem:[%s1 + $0x9c] sm:$0xf]
        %v449 = vld [vmem:[%s1 + $0xa0] sm:$0xf]
        %v450 = vld [vmem:[%s1 + $0xa4] sm:$0xf]
        %v451 = vld [vmem:[%s1 + $0xa8] sm:$0xf]
        %v452 = vld [vmem:[%s1 + $0xac] sm:$0xf]
        %v453 = vld [vmem:[%s1 + $0xb0] sm:$0xf]
        %v454 = vld [vmem:[%s1 + $0xb4] sm:$0xf]
        %v455 = vld [vmem:[%s1 + $0xb8] sm:$0xf]
        %v456 = vld [vmem:[%s1 + $0xbc] sm:$0xf]
        %v457 = vld [vmem:[%s1 + $0xc0] sm:$0xf]
        %v458 = vld [vmem:[%s1 + $0xc4] sm:$0xf]
        %v459 = vld [vmem:[%s1 + $0xc8] sm:$0xf]
        %v460 = vld [vmem:[%s1 + $0xcc] sm:$0xf]
        %v461 = vld [vmem:[%s1 + $0xd0] sm:$0xf]
        %v462 = vld [vmem:[%s1 + $0xd4] sm:$0xf]
        %v463 = vld [vmem:[%s1 + $0xd8] sm:$0xf]
        %v464 = vld [vmem:[%s1 + $0xdc] sm:$0xf]
        %v465 = vld [vmem:[%s1 + $0xe0] sm:$0xf]
        %v466 = vld [vmem:[%s1 + $0xe4] sm:$0xf]
        %v467 = vld [vmem:[%s1 + $0xe8] sm:$0xf]
        %v468 = vld [vmem:[%s1 + $0xec] sm:$0xf]
        %v469 = vld [vmem:[%s1 + $0xf0] sm:$0xf]
        %v470 = vld [vmem:[%s1 + $0xf4] sm:$0xf]
        %v471 = vld [vmem:[%s1 + $0xf8] sm:$0xf]
        %v472 = vld [vmem:[%s1 + $0xfc] sm:$0xf]
        %v473 = vld [vmem:[%s1 + $0x100] sm:$0xf]
        %v474 = vld [vmem:[%s1 + $0x104] sm:$0xf]
        %v475 = vld [vmem:[%s1 + $0x108] sm:$0xf]
        %v476 = vld [vmem:[%s1 + $0x10c] sm:$0xf]
        %v477 = vld [vmem:[%s1 + $0x110] sm:$0xf]
        %v478 = vld [vmem:[%s1 + $0x114] sm:$0xf]
        %v479 = vld [vmem:[%s1 + $0x118] sm:$0xf]
        %v480 = vld [vmem:[%s1 + $0x11c] sm:$0xf]
        %v481 = vld [vmem:[%s1 + $0x120] sm:$0xf]
        %v482 = vld [vmem:[%s1 + $0x124] sm:$0xf]
        %v483 = vld [vmem:[%s1 + $0x128] sm:$0xf]
        %v484 = vld [vmem:[%s1 + $0x12c] sm:$0xf]
        %v485 = vld [vmem:[%s1 + $0x130] sm:$0xf]
        %v486 = vld [vmem:[%s1 + $0x134] sm:$0xf]
        %v487 = vld [vmem:[%s1 + $0x138] sm:$0xf]
        %v488 = vld [vmem:[%s1 + $0x13c] sm:$0xf]
        %v489 = vld [vmem:[%s1 + $0x140] sm:$0xf]
        %v490 = vld [vmem:[%s1 + $0x144] sm:$0xf]
        %v491 = vld [vmem:[%s1 + $0x148] sm:$0xf]
        %v492 = vld [vmem:[%s1 + $0x14c] sm:$0xf]
        %v493 = vld [vmem:[%s1 + $0x150] sm:$0xf]
        %v494 = vld [vmem:[%s1 + $0x154] sm:$0xf]
        %v495 = vld [vmem:[%s1 + $0x158] sm:$0xf]
        %v496 = vld [vmem:[%s1 + $0x15c] sm:$0xf]
        %v497 = vld [vmem:[%s1 + $0x160] sm:$0xf]
        %v498 = vld [vmem:[%s1 + $0x164] sm:$0xf]
        %v499 = vld [vmem:[%s1 + $0x168] sm:$0xf]
        %v500 = vld [vmem:[%s1 + $0x16c] sm:$0xf]
        %v501 = vld [vmem:[%s1 + $0x170] sm:$0xf]
        %v502 = vld [vmem:[%s1 + $0x174] sm:$0xf]
        %v503 = vld [vmem:[%s1 + $0x178] sm:$0xf]
        %v504 = vld [vmem:[%s1 + $0x17c] sm:$0xf]
        %v505 = vld [vmem:[%s1 + $0x180] sm:$0xf]
        %v506 = vld [vmem:[%s1 + $0x184] sm:$0xf]
        %v507 = vld [vmem:[%s1 + $0x188] sm:$0xf]
        %v508 = vld [vmem:[%s1 + $0x18c] sm:$0xf]
        %v509 = vld [vmem:[%s1 + $0x190] sm:$0xf]
        %v510 = vld [vmem:[%s1 + $0x194] sm:$0xf]
        %v511 = vld [vmem:[%s1 + $0x198] sm:$0xf]
        %v512 = vld [vmem:[%s1 + $0x19c] sm:$0xf]
        %v513 = vld [vmem:[%s1 + $0x1a0] sm:$0xf]
        %v514 = vld [vmem:[%s1 + $0x1a4] sm:$0xf]
        %v515 = vld [vmem:[%s1 + $0x1a8] sm:$0xf]
        %v516 = vld [vmem:[%s1 + $0x1ac] sm:$0xf]
        %v517 = vld [vmem:[%s1 + $0x1b0] sm:$0xf]
        %v518 = vld [vmem:[%s1 + $0x1b4] sm:$0xf]
        %v519 = vld [vmem:[%s1 + $0x1b8] sm:$0xf]
        %v520 = vld [vmem:[%s1 + $0x1bc] sm:$0xf]
        %v521 = vld [vmem:[%s1 + $0x1c0] sm:$0xf]
        %v522 = vld [vmem:[%s1 + $0x1c4] sm:$0xf]
        %v523 = vld [vmem:[%s1 + $0x1c8] sm:$0xf]
        %v524 = vld [vmem:[%s1 + $0x1cc] sm:$0xf]
        %v525 = vld [vmem:[%s1 + $0x1d0] sm:$0xf]
        %v526 = vld [vmem:[%s1 + $0x1d4] sm:$0xf]
        %v527 = vld [vmem:[%s1 + $0x1d8] sm:$0xf]
        %v528 = vld [vmem:[%s1 + $0x1dc] sm:$0xf]
        %v529 = vld [vmem:[%s1 + $0x1e0] sm:$0xf]
        %v530 = vld [vmem:[%s1 + $0x1e4] sm:$0xf]
        %v531 = vld [vmem:[%s1 + $0x1e8] sm:$0xf]
        %v532 = vld [vmem:[%s1 + $0x1ec] sm:$0xf]
        %v533 = vld [vmem:[%s1 + $0x1f0] sm:$0xf]
        %v534 = vld [vmem:[%s1 + $0x1f4] sm:$0xf]
        %v535 = vld [vmem:[%s1 + $0x1f8] sm:$0xf]
        %v536 = vld [vmem:[%s1 + $0x1fc] sm:$0xf]
        %s537 = smul.u32 %s29, 8
        %s538 = scalar_lea.vmem [#allocation2], %s537
        %v539 = vld [vmem:[%s538] sm:$0xff]
        %v540 = vld [vmem:[%s390] sm:$0xff]
        %v541 = vld [vmem:[%s390 + $0x8] sm:$0xff]
        %v542 = vld [vmem:[%s390 + $0x10] sm:$0xff]
        %v543 = vld [vmem:[%s390 + $0x18] sm:$0xff]
        %v544 = vld [vmem:[%s390 + $0x20] sm:$0xff]
        %v545 = vld [vmem:[%s390 + $0x28] sm:$0xff]
        %v546 = vld [vmem:[%s390 + $0x30] sm:$0xff]
        %v547 = vld [vmem:[%s390 + $0x38] sm:$0xff]
        %v548 = vpack.c.bf16 %v540, %v540
        %v549 = vpack.c.bf16 %v541, %v541
        %v550 = vpack.c.bf16 %v542, %v542
        %v551 = vpack.c.bf16 %v543, %v543
        %v552 = vpack.c.bf16 %v544, %v544
        %v553 = vpack.c.bf16 %v545, %v545
        %v554 = vpack.c.bf16 %v546, %v546
        %v555 = vpack.c.bf16 %v547, %v547
        %v684 = vunpack.c.l.b16 %v409
        %v685 = vunpack.c.l.b16 %v410
        %v686 = vunpack.c.l.b16 %v411
        %v687 = vunpack.c.l.b16 %v412
        %v688 = vunpack.c.l.b16 %v413
        %v689 = vunpack.c.l.b16 %v414
        %v690 = vunpack.c.l.b16 %v415
        %v691 = vunpack.c.l.b16 %v416
        %v692 = vunpack.c.l.b16 %v417
        %v693 = vunpack.c.l.b16 %v418
        %v694 = vunpack.c.l.b16 %v419
        %v695 = vunpack.c.l.b16 %v420
        %v696 = vunpack.c.l.b16 %v421
        %v697 = vunpack.c.l.b16 %v422
        %v698 = vunpack.c.l.b16 %v423
        %v699 = vunpack.c.l.b16 %v424
        %v700 = vunpack.c.l.b16 %v425
        %v701 = vunpack.c.l.b16 %v426
        %v702 = vunpack.c.l.b16 %v427
        %v703 = vunpack.c.l.b16 %v428
        %v704 = vunpack.c.l.b16 %v429
        %v705 = vunpack.c.l.b16 %v430
        %v706 = vunpack.c.l.b16 %v431
        %v707 = vunpack.c.l.b16 %v432
        %v708 = vunpack.c.l.b16 %v433
        %v709 = vunpack.c.l.b16 %v434
        %v710 = vunpack.c.l.b16 %v435
        %v711 = vunpack.c.l.b16 %v436
        %v712 = vunpack.c.l.b16 %v437
        %v713 = vunpack.c.l.b16 %v438
        %v714 = vunpack.c.l.b16 %v439
        %v715 = vunpack.c.l.b16 %v440
        %v716 = vunpack.c.l.b16 %v441
        %v717 = vunpack.c.l.b16 %v442
        %v718 = vunpack.c.l.b16 %v443
        %v719 = vunpack.c.l.b16 %v444
        %v720 = vunpack.c.l.b16 %v445
        %v721 = vunpack.c.l.b16 %v446
        %v722 = vunpack.c.l.b16 %v447
        %v723 = vunpack.c.l.b16 %v448
        %v724 = vunpack.c.l.b16 %v449
        %v725 = vunpack.c.l.b16 %v450
        %v726 = vunpack.c.l.b16 %v451
        %v727 = vunpack.c.l.b16 %v452
        %v728 = vunpack.c.l.b16 %v453
        %v729 = vunpack.c.l.b16 %v454
        %v730 = vunpack.c.l.b16 %v455
        %v731 = vunpack.c.l.b16 %v456
        %v732 = vunpack.c.l.b16 %v457
        %v733 = vunpack.c.l.b16 %v458
        %v734 = vunpack.c.l.b16 %v459
        %v735 = vunpack.c.l.b16 %v460
        %v736 = vunpack.c.l.b16 %v461
        %v737 = vunpack.c.l.b16 %v462
        %v738 = vunpack.c.l.b16 %v463
        %v739 = vunpack.c.l.b16 %v464
        %v740 = vunpack.c.l.b16 %v465
        %v741 = vunpack.c.l.b16 %v466
        %v742 = vunpack.c.l.b16 %v467
        %v743 = vunpack.c.l.b16 %v468
        %v744 = vunpack.c.l.b16 %v469
        %v745 = vunpack.c.l.b16 %v470
        %v746 = vunpack.c.l.b16 %v471
        %v747 = vunpack.c.l.b16 %v472
        %v748 = vunpack.c.l.b16 %v473
        %v749 = vunpack.c.l.b16 %v474
        %v750 = vunpack.c.l.b16 %v475
        %v751 = vunpack.c.l.b16 %v476
        %v752 = vunpack.c.l.b16 %v477
        %v753 = vunpack.c.l.b16 %v478
        %v754 = vunpack.c.l.b16 %v479
        %v755 = vunpack.c.l.b16 %v480
        %v756 = vunpack.c.l.b16 %v481
        %v757 = vunpack.c.l.b16 %v482
        %v758 = vunpack.c.l.b16 %v483
        %v759 = vunpack.c.l.b16 %v484
        %v760 = vunpack.c.l.b16 %v485
        %v761 = vunpack.c.l.b16 %v486
        %v762 = vunpack.c.l.b16 %v487
        %v763 = vunpack.c.l.b16 %v488
        %v764 = vunpack.c.l.b16 %v489
        %v765 = vunpack.c.l.b16 %v490
        %v766 = vunpack.c.l.b16 %v491
        %v767 = vunpack.c.l.b16 %v492
        %v768 = vunpack.c.l.b16 %v493
        %v769 = vunpack.c.l.b16 %v494
        %v770 = vunpack.c.l.b16 %v495
        %v771 = vunpack.c.l.b16 %v496
        %v772 = vunpack.c.l.b16 %v497
        %v773 = vunpack.c.l.b16 %v498
        %v774 = vunpack.c.l.b16 %v499
        %v775 = vunpack.c.l.b16 %v500
        %v776 = vunpack.c.l.b16 %v501
        %v777 = vunpack.c.l.b16 %v502
        %v778 = vunpack.c.l.b16 %v503
        %v779 = vunpack.c.l.b16 %v504
        %v780 = vunpack.c.l.b16 %v505
        %v781 = vunpack.c.l.b16 %v506
        %v782 = vunpack.c.l.b16 %v507
        %v783 = vunpack.c.l.b16 %v508
        %v784 = vunpack.c.l.b16 %v509
        %v785 = vunpack.c.l.b16 %v510
        %v786 = vunpack.c.l.b16 %v511
        %v787 = vunpack.c.l.b16 %v512
        %v788 = vunpack.c.l.b16 %v513
        %v789 = vunpack.c.l.b16 %v514
        %v790 = vunpack.c.l.b16 %v515
        %v791 = vunpack.c.l.b16 %v516
        %v792 = vunpack.c.l.b16 %v517
        %v793 = vunpack.c.l.b16 %v518
        %v794 = vunpack.c.l.b16 %v519
        %v795 = vunpack.c.l.b16 %v520
        %v796 = vunpack.c.l.b16 %v521
        %v797 = vunpack.c.l.b16 %v522
        %v798 = vunpack.c.l.b16 %v523
        %v799 = vunpack.c.l.b16 %v524
        %v800 = vunpack.c.l.b16 %v525
        %v801 = vunpack.c.l.b16 %v526
        %v802 = vunpack.c.l.b16 %v527
        %v803 = vunpack.c.l.b16 %v528
        %v804 = vunpack.c.l.b16 %v529
        %v805 = vunpack.c.l.b16 %v530
        %v806 = vunpack.c.l.b16 %v531
        %v807 = vunpack.c.l.b16 %v532
        %v808 = vunpack.c.l.b16 %v533
        %v809 = vunpack.c.l.b16 %v534
        %v810 = vunpack.c.l.b16 %v535
        %v811 = vunpack.c.l.b16 %v536
        %v812 = vpack.c.b16 %v685, %v684
        %v813 = vpack.c.b16 %v687, %v686
        %v814 = vpack.c.b16 %v689, %v688
        %v815 = vpack.c.b16 %v691, %v690
        %v816 = vpack.c.b16 %v693, %v692
        %v817 = vpack.c.b16 %v695, %v694
        %v818 = vpack.c.b16 %v697, %v696
        %v819 = vpack.c.b16 %v699, %v698
        %v820 = vpack.c.b16 %v701, %v700
        %v821 = vpack.c.b16 %v703, %v702
        %v822 = vpack.c.b16 %v705, %v704
        %v823 = vpack.c.b16 %v707, %v706
        %v824 = vpack.c.b16 %v709, %v708
        %v825 = vpack.c.b16 %v711, %v710
        %v826 = vpack.c.b16 %v713, %v712
        %v827 = vpack.c.b16 %v715, %v714
        %v828 = vpack.c.b16 %v717, %v716
        %v829 = vpack.c.b16 %v719, %v718
        %v830 = vpack.c.b16 %v721, %v720
        %v831 = vpack.c.b16 %v723, %v722
        %v832 = vpack.c.b16 %v725, %v724
        %v833 = vpack.c.b16 %v727, %v726
        %v834 = vpack.c.b16 %v729, %v728
        %v835 = vpack.c.b16 %v731, %v730
        %v836 = vpack.c.b16 %v733, %v732
        %v837 = vpack.c.b16 %v735, %v734
        %v838 = vpack.c.b16 %v737, %v736
        %v839 = vpack.c.b16 %v739, %v738
        %v840 = vpack.c.b16 %v741, %v740
        %v841 = vpack.c.b16 %v743, %v742
        %v842 = vpack.c.b16 %v745, %v744
        %v843 = vpack.c.b16 %v747, %v746
        %v844 = vpack.c.b16 %v749, %v748
        %v845 = vpack.c.b16 %v751, %v750
        %v846 = vpack.c.b16 %v753, %v752
        %v847 = vpack.c.b16 %v755, %v754
        %v848 = vpack.c.b16 %v757, %v756
        %v849 = vpack.c.b16 %v759, %v758
        %v850 = vpack.c.b16 %v761, %v760
        %v851 = vpack.c.b16 %v763, %v762
        %v852 = vpack.c.b16 %v765, %v764
        %v853 = vpack.c.b16 %v767, %v766
        %v854 = vpack.c.b16 %v769, %v768
        %v855 = vpack.c.b16 %v771, %v770
        %v856 = vpack.c.b16 %v773, %v772
        %v857 = vpack.c.b16 %v775, %v774
        %v858 = vpack.c.b16 %v777, %v776
        %v859 = vpack.c.b16 %v779, %v778
        %v860 = vpack.c.b16 %v781, %v780
        %v861 = vpack.c.b16 %v783, %v782
        %v862 = vpack.c.b16 %v785, %v784
        %v863 = vpack.c.b16 %v787, %v786
        %v864 = vpack.c.b16 %v789, %v788
        %v865 = vpack.c.b16 %v791, %v790
        %v866 = vpack.c.b16 %v793, %v792
        %v867 = vpack.c.b16 %v795, %v794
        %v868 = vpack.c.b16 %v797, %v796
        %v869 = vpack.c.b16 %v799, %v798
        %v870 = vpack.c.b16 %v801, %v800
        %v871 = vpack.c.b16 %v803, %v802
        %v872 = vpack.c.b16 %v805, %v804
        %v873 = vpack.c.b16 %v807, %v806
        %v874 = vpack.c.b16 %v809, %v808
        %v875 = vpack.c.b16 %v811, %v810
        %940 = vmatprep.subr.bf16.mxu0 0
        %941 = vmatpush1.bf16.msra.mxu0 %v812
        %942 = vmatprep.subr.bf16.mxu0 0
        %943 = vmatpush1.bf16.msra.mxu0 %v813
        %944 = vmatprep.subr.bf16.mxu0 0
        %945 = vmatpush1.bf16.msra.mxu0 %v814
        %946 = vmatprep.subr.bf16.mxu0 0
        %947 = vmatpush1.bf16.msra.mxu0 %v815
        %948 = vmatprep.subr.bf16.mxu0 0
        %949 = vmatpush1.bf16.msra.mxu0 %v816
        %950 = vmatprep.subr.bf16.mxu0 0
        %951 = vmatpush1.bf16.msra.mxu0 %v817
        %952 = vmatprep.subr.bf16.mxu0 0
        %953 = vmatpush1.bf16.msra.mxu0 %v818
        %954 = vmatprep.subr.bf16.mxu0 0
        %955 = vmatpush1.bf16.msra.mxu0 %v819
        %956 = vmatprep.subr.bf16.mxu0 0
        %957 = vmatpush1.bf16.msra.mxu0 %v820
        %958 = vmatprep.subr.bf16.mxu0 0
        %959 = vmatpush1.bf16.msra.mxu0 %v821
        %960 = vmatprep.subr.bf16.mxu0 0
        %961 = vmatpush1.bf16.msra.mxu0 %v822
        %962 = vmatprep.subr.bf16.mxu0 0
        %963 = vmatpush1.bf16.msra.mxu0 %v823
        %964 = vmatprep.subr.bf16.mxu0 0
        %965 = vmatpush1.bf16.msra.mxu0 %v824
        %966 = vmatprep.subr.bf16.mxu0 0
        %967 = vmatpush1.bf16.msra.mxu0 %v825
        %968 = vmatprep.subr.bf16.mxu0 0
        %969 = vmatpush1.bf16.msra.mxu0 %v826
        %970 = vmatprep.subr.bf16.mxu0 0
        %971 = vmatpush1.bf16.msra.mxu0 %v827
        %972 = vmatprep.mubr.bf16.mxu0 %v549
        %973 = vmatmul.mubr.bf16.gmra.mrb[0].mxu0 %v548
        %v974 = vpop.f32.mrb[0].mxu0
        %v975 = vadd.f32 0.0, %v974
        %v976 = vpop.f32.mrb[0].mxu0
        %v977 = vpop.f32.mrb[0].mxu0
        %v978 = vpop.f32.mrb[0].mxu0
        %979 = vdwg.mxu0
        %980 = vmatprep.subr.bf16.mxu0 0
        %981 = vmatpush1.bf16.msra.mxu0 %v828
        %982 = vmatprep.subr.bf16.mxu0 0
        %983 = vmatpush1.bf16.msra.mxu0 %v829
        %984 = vmatprep.subr.bf16.mxu0 0
        %985 = vmatpush1.bf16.msra.mxu0 %v830
        %986 = vmatprep.subr.bf16.mxu0 0
        %987 = vmatpush1.bf16.msra.mxu0 %v831
        %988 = vmatprep.subr.bf16.mxu0 0
        %989 = vmatpush1.bf16.msra.mxu0 %v832
        %990 = vmatprep.subr.bf16.mxu0 0
        %991 = vmatpush1.bf16.msra.mxu0 %v833
        %992 = vmatprep.subr.bf16.mxu0 0
        %993 = vmatpush1.bf16.msra.mxu0 %v834
        %994 = vmatprep.subr.bf16.mxu0 0
        %995 = vmatpush1.bf16.msra.mxu0 %v835
        %996 = vmatprep.subr.bf16.mxu0 0
        %997 = vmatpush1.bf16.msra.mxu0 %v836
        %998 = vmatprep.subr.bf16.mxu0 0
        %999 = vmatpush1.bf16.msra.mxu0 %v837
        %1000 = vmatprep.subr.bf16.mxu0 0
        %1001 = vmatpush1.bf16.msra.mxu0 %v838
        %1002 = vmatprep.subr.bf16.mxu0 0
        %1003 = vmatpush1.bf16.msra.mxu0 %v839
        %1004 = vmatprep.subr.bf16.mxu0 0
        %1005 = vmatpush1.bf16.msra.mxu0 %v840
        %1006 = vmatprep.subr.bf16.mxu0 0
        %1007 = vmatpush1.bf16.msra.mxu0 %v841
        %1008 = vmatprep.subr.bf16.mxu0 0
        %1009 = vmatpush1.bf16.msra.mxu0 %v842
        %1010 = vmatprep.subr.bf16.mxu0 0
        %1011 = vmatpush1.bf16.msra.mxu0 %v843
        %1012 = vmatprep.mubr.bf16.mxu0 %v551
        %1013 = vmatmul.mubr.bf16.gmra.mrb[0].mxu0 %v550
        %v1014 = vpop.f32.mrb[0].mxu0
        %v1015 = vadd.f32 %v975, %v1014
        %v1016 = vpop.f32.mrb[0].mxu0
        %v1017 = vpop.f32.mrb[0].mxu0
        %v1018 = vpop.f32.mrb[0].mxu0
        %1019 = vdwg.mxu0
        %1020 = vmatprep.subr.bf16.mxu0 0
        %1021 = vmatpush1.bf16.msra.mxu0 %v844
        %1022 = vmatprep.subr.bf16.mxu0 0
        %1023 = vmatpush1.bf16.msra.mxu0 %v845
        %1024 = vmatprep.subr.bf16.mxu0 0
        %1025 = vmatpush1.bf16.msra.mxu0 %v846
        %1026 = vmatprep.subr.bf16.mxu0 0
        %1027 = vmatpush1.bf16.msra.mxu0 %v847
        %1028 = vmatprep.subr.bf16.mxu0 0
        %1029 = vmatpush1.bf16.msra.mxu0 %v848
        %1030 = vmatprep.subr.bf16.mxu0 0
        %1031 = vmatpush1.bf16.msra.mxu0 %v849
        %1032 = vmatprep.subr.bf16.mxu0 0
        %1033 = vmatpush1.bf16.msra.mxu0 %v850
        %1034 = vmatprep.subr.bf16.mxu0 0
        %1035 = vmatpush1.bf16.msra.mxu0 %v851
        %1036 = vmatprep.subr.bf16.mxu0 0
        %1037 = vmatpush1.bf16.msra.mxu0 %v852
        %1038 = vmatprep.subr.bf16.mxu0 0
        %1039 = vmatpush1.bf16.msra.mxu0 %v853
        %1040 = vmatprep.subr.bf16.mxu0 0
        %1041 = vmatpush1.bf16.msra.mxu0 %v854
        %1042 = vmatprep.subr.bf16.mxu0 0
        %1043 = vmatpush1.bf16.msra.mxu0 %v855
        %1044 = vmatprep.subr.bf16.mxu0 0
        %1045 = vmatpush1.bf16.msra.mxu0 %v856
        %1046 = vmatprep.subr.bf16.mxu0 0
        %1047 = vmatpush1.bf16.msra.mxu0 %v857
        %1048 = vmatprep.subr.bf16.mxu0 0
        %1049 = vmatpush1.bf16.msra.mxu0 %v858
        %1050 = vmatprep.subr.bf16.mxu0 0
        %1051 = vmatpush1.bf16.msra.mxu0 %v859
        %1052 = vmatprep.mubr.bf16.mxu0 %v553
        %1053 = vmatmul.mubr.bf16.gmra.mrb[0].mxu0 %v552
        %v1054 = vpop.f32.mrb[0].mxu0
        %v1055 = vadd.f32 %v1015, %v1054
        %v1056 = vpop.f32.mrb[0].mxu0
        %v1057 = vpop.f32.mrb[0].mxu0
        %v1058 = vpop.f32.mrb[0].mxu0
        %1059 = vdwg.mxu0
        %1060 = vmatprep.subr.bf16.mxu0 0
        %1061 = vmatpush1.bf16.msra.mxu0 %v860
        %1062 = vmatprep.subr.bf16.mxu0 0
        %1063 = vmatpush1.bf16.msra.mxu0 %v861
        %1064 = vmatprep.subr.bf16.mxu0 0
        %1065 = vmatpush1.bf16.msra.mxu0 %v862
        %1066 = vmatprep.subr.bf16.mxu0 0
        %1067 = vmatpush1.bf16.msra.mxu0 %v863
        %1068 = vmatprep.subr.bf16.mxu0 0
        %1069 = vmatpush1.bf16.msra.mxu0 %v864
        %1070 = vmatprep.subr.bf16.mxu0 0
        %1071 = vmatpush1.bf16.msra.mxu0 %v865
        %1072 = vmatprep.subr.bf16.mxu0 0
        %1073 = vmatpush1.bf16.msra.mxu0 %v866
        %1074 = vmatprep.subr.bf16.mxu0 0
        %1075 = vmatpush1.bf16.msra.mxu0 %v867
        %1076 = vmatprep.subr.bf16.mxu0 0
        %1077 = vmatpush1.bf16.msra.mxu0 %v868
        %1078 = vmatprep.subr.bf16.mxu0 0
        %1079 = vmatpush1.bf16.msra.mxu0 %v869
        %1080 = vmatprep.subr.bf16.mxu0 0
        %1081 = vmatpush1.bf16.msra.mxu0 %v870
        %1082 = vmatprep.subr.bf16.mxu0 0
        %1083 = vmatpush1.bf16.msra.mxu0 %v871
        %1084 = vmatprep.subr.bf16.mxu0 0
        %1085 = vmatpush1.bf16.msra.mxu0 %v872
        %1086 = vmatprep.subr.bf16.mxu0 0
        %1087 = vmatpush1.bf16.msra.mxu0 %v873
        %1088 = vmatprep.subr.bf16.mxu0 0
        %1089 = vmatpush1.bf16.msra.mxu0 %v874
        %1090 = vmatprep.subr.bf16.mxu0 0
        %1091 = vmatpush1.bf16.msra.mxu0 %v875
        %1092 = vmatprep.mubr.bf16.mxu0 %v555
        %1093 = vmatmul.mubr.bf16.gmra.mrb[0].mxu0 %v554
        %v1094 = vpop.f32.mrb[0].mxu0
        %v1095 = vadd.f32 %v1055, %v1094
        %v1096 = vpop.f32.mrb[0].mxu0
        %v1097 = vpop.f32.mrb[0].mxu0
        %v1098 = vpop.f32.mrb[0].mxu0
        %1099 = vdwg.mxu0
        %v1100 = vadd.f32 %v539, %v1095
        %vm1101 = vcmask 261120
        %1102 = vst.msk [vmem:[%s538] sm:$0xff] %vm1101, %v1100
        %p1103 = scmp.eq.s32.totalorder %s29, 1
        %p1104 = pnand %p394, %p1103
        %p1105 = pneg %p1104
        // Predicated region
        $region65: #{tpu_custom_call.1} parent=59 // pred_check
          _
        $region66: #{tpu_custom_call.1} parent=59 // pred_check_branch
          %1107 = sbr.rel (%p1104) target = $region68
        $region67: #{tpu_custom_call.1} parent=59 // pred_region
          %v1108 = vld [vmem:[#allocation2] sm:$0xff]
          %v1109 = vld [vmem:[%s3] sm:$0xff]
          %v1110 = vld [vmem:[%s3 + $0x8] sm:$0xff]
          %v1111 = vld [vmem:[%s3 + $0x10] sm:$0xff]
          %v1112 = vld [vmem:[%s3 + $0x18] sm:$0xff]
          %v1113 = vld [vmem:[%s4] sm:$0x1]
          %v1115 = vlaneseq
          %v1116 = vshrl.u32 %v1115, 7
          %v1117 = vsub.s32 0, %v1116
          %v1118 = vrot.slane %v1113, %v1117
          %v1121 = vsel %vm1101, %v1108, 0
          %1123 = vmatprep.subr.mxu0 0.0
          %1124 = vmatpush1.msra.mxu0 %v1109
          %1125 = vmatprep.subr.mxu0 0.0
          %1126 = vmatpush1.msra.mxu0 %v1110
          %1127 = vmatprep.subr.mxu0 0.0
          %1128 = vmatpush1.msra.mxu0 %v1111
          %1129 = vmatprep.subr.mxu0 0.0
          %1130 = vmatpush1.msra.mxu0 %v1112
          %1131 = vmatprep.subr.mxu0 0.0
          %1132 = vmatpush1.msra.mxu0 0.0
          %1133 = vmatprep.subr.mxu0 0.0
          %1134 = vmatpush1.msra.mxu0 0.0
          %1135 = vmatprep.subr.mxu0 0.0
          %1136 = vmatpush1.msra.mxu0 0.0
          %1137 = vmatprep.subr.mxu0 0.0
          %1138 = vmatpush1.msra.mxu0 0.0
          %1139 = vmatprep.subr.mxu0 0.0
          %1140 = vmatpush1.msra.mxu0 0.0
          %1141 = vmatprep.subr.mxu0 0.0
          %1142 = vmatpush1.msra.mxu0 0.0
          %1143 = vmatprep.subr.mxu0 0.0
          %1144 = vmatpush1.msra.mxu0 0.0
          %1145 = vmatprep.subr.mxu0 0.0
          %1146 = vmatpush1.msra.mxu0 0.0
          %1147 = vmatprep.subr.mxu0 0.0
          %1148 = vmatpush1.msra.mxu0 0.0
          %1149 = vmatprep.subr.mxu0 0.0
          %1150 = vmatpush1.msra.mxu0 0.0
          %1151 = vmatprep.subr.mxu0 0.0
          %1152 = vmatpush1.msra.mxu0 0.0
          %1153 = vmatprep.subr.mxu0 0.0
          %1154 = vmatpush1.msra.mxu0 0.0
          %1155 = vmatprep.subr.mxu0 0.0
          %1156 = vmatpush1.msra.mxu0 0.0
          %1157 = vmatprep.subr.mxu0 0.0
          %1158 = vmatpush1.msra.mxu0 0.0
          %1159 = vmatprep.subr.mxu0 0.0
          %1160 = vmatpush1.msra.mxu0 0.0
          %1161 = vmatprep.subr.mxu0 0.0
          %1162 = vmatpush1.msra.mxu0 0.0
          %1163 = vmatprep.subr.mxu0 0.0
          %1164 = vmatpush1.msra.mxu0 0.0
          %1165 = vmatprep.subr.mxu0 0.0
          %1166 = vmatpush1.msra.mxu0 0.0
          %1167 = vmatprep.subr.mxu0 0.0
          %1168 = vmatpush1.msra.mxu0 0.0
          %1169 = vmatprep.subr.mxu0 0.0
          %1170 = vmatpush1.msra.mxu0 0.0
          %1171 = vmatprep.subr.mxu0 0.0
          %1172 = vmatpush1.msra.mxu0 0.0
          %1173 = vmatprep.subr.mxu0 0.0
          %1174 = vmatpush1.msra.mxu0 0.0
          %1175 = vmatprep.subr.mxu0 0.0
          %1176 = vmatpush1.msra.mxu0 0.0
          %1177 = vmatprep.subr.mxu0 0.0
          %1178 = vmatpush1.msra.mxu0 0.0
          %1179 = vmatprep.subr.mxu0 0.0
          %1180 = vmatpush1.msra.mxu0 0.0
          %1181 = vmatprep.subr.mxu0 0.0
          %1182 = vmatpush1.msra.mxu0 0.0
          %1183 = vmatprep.subr.mxu0 0.0
          %1184 = vmatpush1.msra.mxu0 0.0
          %1185 = vmatprep.subr.mxu0 0.0
          %1186 = vmatpush1.msra.mxu0 0.0
          %1187 = vmatprep.mubr.f32.mxu0 0.0
          %1188 = vmatmul.mubr.f32.gmra.mrb[0].mxu0 %v1121
          %v1189 = vpop.f32.mrb[0].mxu0
          %v1190 = vadd.f32 %v1118, %v1189
          %v1191 = vpop.f32.mrb[0].mxu0
          %1192 = vdwg.mxu0
          %v1193 = vmax.f32 %v1190, 0.0
          %s1194 = scalar_lea.vmem [#allocation2], 8
          %v1195 = vld [vmem:[%s1194] sm:$0xff]
          %v1197 = vsel %vm1101, %v1195, 0
          %1199 = vmatprep.subr.mxu0 0.0
          %1200 = vmatpush1.msra.mxu0 %v1109
          %1201 = vmatprep.subr.mxu0 0.0
          %1202 = vmatpush1.msra.mxu0 %v1110
          %1203 = vmatprep.subr.mxu0 0.0
          %1204 = vmatpush1.msra.mxu0 %v1111
          %1205 = vmatprep.subr.mxu0 0.0
          %1206 = vmatpush1.msra.mxu0 %v1112
          %1207 = vmatprep.subr.mxu0 0.0
          %1208 = vmatpush1.msra.mxu0 0.0
          %1209 = vmatprep.subr.mxu0 0.0
          %1210 = vmatpush1.msra.mxu0 0.0
          %1211 = vmatprep.subr.mxu0 0.0
          %1212 = vmatpush1.msra.mxu0 0.0
          %1213 = vmatprep.subr.mxu0 0.0
          %1214 = vmatpush1.msra.mxu0 0.0
          %1215 = vmatprep.subr.mxu0 0.0
          %1216 = vmatpush1.msra.mxu0 0.0
          %1217 = vmatprep.subr.mxu0 0.0
          %1218 = vmatpush1.msra.mxu0 0.0
          %1219 = vmatprep.subr.mxu0 0.0
          %1220 = vmatpush1.msra.mxu0 0.0
          %1221 = vmatprep.subr.mxu0 0.0
          %1222 = vmatpush1.msra.mxu0 0.0
          %1223 = vmatprep.subr.mxu0 0.0
          %1224 = vmatpush1.msra.mxu0 0.0
          %1225 = vmatprep.subr.mxu0 0.0
          %1226 = vmatpush1.msra.mxu0 0.0
          %1227 = vmatprep.subr.mxu0 0.0
          %1228 = vmatpush1.msra.mxu0 0.0
          %1229 = vmatprep.subr.mxu0 0.0
          %1230 = vmatpush1.msra.mxu0 0.0
          %1231 = vmatprep.subr.mxu0 0.0
          %1232 = vmatpush1.msra.mxu0 0.0
          %1233 = vmatprep.subr.mxu0 0.0
          %1234 = vmatpush1.msra.mxu0 0.0
          %1235 = vmatprep.subr.mxu0 0.0
          %1236 = vmatpush1.msra.mxu0 0.0
          %1237 = vmatprep.subr.mxu0 0.0
          %1238 = vmatpush1.msra.mxu0 0.0
          %1239 = vmatprep.subr.mxu0 0.0
          %1240 = vmatpush1.msra.mxu0 0.0
          %1241 = vmatprep.subr.mxu0 0.0
          %1242 = vmatpush1.msra.mxu0 0.0
          %1243 = vmatprep.subr.mxu0 0.0
          %1244 = vmatpush1.msra.mxu0 0.0
          %1245 = vmatprep.subr.mxu0 0.0
          %1246 = vmatpush1.msra.mxu0 0.0
          %1247 = vmatprep.subr.mxu0 0.0
          %1248 = vmatpush1.msra.mxu0 0.0
          %1249 = vmatprep.subr.mxu0 0.0
          %1250 = vmatpush1.msra.mxu0 0.0
          %1251 = vmatprep.subr.mxu0 0.0
          %1252 = vmatpush1.msra.mxu0 0.0
          %1253 = vmatprep.subr.mxu0 0.0
          %1254 = vmatpush1.msra.mxu0 0.0
          %1255 = vmatprep.subr.mxu0 0.0
          %1256 = vmatpush1.msra.mxu0 0.0
          %1257 = vmatprep.subr.mxu0 0.0
          %1258 = vmatpush1.msra.mxu0 0.0
          %1259 = vmatprep.subr.mxu0 0.0
          %1260 = vmatpush1.msra.mxu0 0.0
          %1261 = vmatprep.subr.mxu0 0.0
          %1262 = vmatpush1.msra.mxu0 0.0
          %1263 = vmatprep.mubr.f32.mxu0 0.0
          %1264 = vmatmul.mubr.f32.gmra.mrb[0].mxu0 %v1197
          %v1265 = vpop.f32.mrb[0].mxu0
          %v1266 = vadd.f32 %v1118, %v1265
          %v1267 = vpop.f32.mrb[0].mxu0
          %1268 = vdwg.mxu0
          %v1269 = vmax.f32 %v1266, 0.0
          %v1270 = vld [vmem:[%s5] sm:$0xff]
          %v1271 = vld [vmem:[%s5 + $0x8] sm:$0x3]
          %v1272 = vld [vmem:[%s6] sm:$0xff]
          %v1273 = vld [vmem:[%s6 + $0x8] sm:$0x3]
          %vm1274 = vcmask 80896
          %v1276 = vsel %vm1274, %v1269, 0
          %vm1278 = vcmask 1041408
          %v1280 = vsel %vm1278, %v1273, 0
          %1282 = vmatprep.subr.mxu0 0.0
          %1283 = vmatpush1.msra.mxu0 %v1272
          %1284 = vmatprep.subr.mxu0 0.0
          %1285 = vmatpush1.msra.mxu0 %v1280
          %1286 = vmatprep.subr.mxu0 0.0
          %1287 = vmatpush1.msra.mxu0 0.0
          %1288 = vmatprep.subr.mxu0 0.0
          %1289 = vmatpush1.msra.mxu0 0.0
          %1290 = vmatprep.subr.mxu0 0.0
          %1291 = vmatpush1.msra.mxu0 0.0
          %1292 = vmatprep.subr.mxu0 0.0
          %1293 = vmatpush1.msra.mxu0 0.0
          %1294 = vmatprep.subr.mxu0 0.0
          %1295 = vmatpush1.msra.mxu0 0.0
          %1296 = vmatprep.subr.mxu0 0.0
          %1297 = vmatpush1.msra.mxu0 0.0
          %1298 = vmatprep.subr.mxu0 0.0
          %1299 = vmatpush1.msra.mxu0 0.0
          %1300 = vmatprep.subr.mxu0 0.0
          %1301 = vmatpush1.msra.mxu0 0.0
          %1302 = vmatprep.subr.mxu0 0.0
          %1303 = vmatpush1.msra.mxu0 0.0
          %1304 = vmatprep.subr.mxu0 0.0
          %1305 = vmatpush1.msra.mxu0 0.0
          %1306 = vmatprep.subr.mxu0 0.0
          %1307 = vmatpush1.msra.mxu0 0.0
          %1308 = vmatprep.subr.mxu0 0.0
          %1309 = vmatpush1.msra.mxu0 0.0
          %1310 = vmatprep.subr.mxu0 0.0
          %1311 = vmatpush1.msra.mxu0 0.0
          %1312 = vmatprep.subr.mxu0 0.0
          %1313 = vmatpush1.msra.mxu0 0.0
          %1314 = vmatprep.subr.mxu0 0.0
          %1315 = vmatpush1.msra.mxu0 0.0
          %1316 = vmatprep.subr.mxu0 0.0
          %1317 = vmatpush1.msra.mxu0 0.0
          %1318 = vmatprep.subr.mxu0 0.0
          %1319 = vmatpush1.msra.mxu0 0.0
          %1320 = vmatprep.subr.mxu0 0.0
          %1321 = vmatpush1.msra.mxu0 0.0
          %1322 = vmatprep.subr.mxu0 0.0
          %1323 = vmatpush1.msra.mxu0 0.0
          %1324 = vmatprep.subr.mxu0 0.0
          %1325 = vmatpush1.msra.mxu0 0.0
          %1326 = vmatprep.subr.mxu0 0.0
          %1327 = vmatpush1.msra.mxu0 0.0
          %1328 = vmatprep.subr.mxu0 0.0
          %1329 = vmatpush1.msra.mxu0 0.0
          %1330 = vmatprep.subr.mxu0 0.0
          %1331 = vmatpush1.msra.mxu0 0.0
          %1332 = vmatprep.subr.mxu0 0.0
          %1333 = vmatpush1.msra.mxu0 0.0
          %1334 = vmatprep.subr.mxu0 0.0
          %1335 = vmatpush1.msra.mxu0 0.0
          %1336 = vmatprep.subr.mxu0 0.0
          %1337 = vmatpush1.msra.mxu0 0.0
          %1338 = vmatprep.subr.mxu0 0.0
          %1339 = vmatpush1.msra.mxu0 0.0
          %1340 = vmatprep.subr.mxu0 0.0
          %1341 = vmatpush1.msra.mxu0 0.0
          %1342 = vmatprep.subr.mxu0 0.0
          %1343 = vmatpush1.msra.mxu0 0.0
          %1344 = vmatprep.subr.mxu0 0.0
          %1345 = vmatpush1.msra.mxu0 0.0
          %1346 = vmatprep.mubr.f32.mxu0 0.0
          %1347 = vmatmul.mubr.f32.gmra.mrb[0].mxu0 %v1276
          %v1348 = vpop.f32.mrb[0].mxu0
          %v1349 = vadd.f32 0.0, %v1348
          %v1350 = vpop.f32.mrb[0].mxu0
          %1351 = vdwg.mxu0
          %v1353 = vsel %vm1274, %v1193, 0
          %v1356 = vsel %vm1278, %v1271, 0
          %1358 = vmatprep.subr.mxu0 0.0
          %1359 = vmatpush1.msra.mxu0 %v1270
          %1360 = vmatprep.subr.mxu0 0.0
          %1361 = vmatpush1.msra.mxu0 %v1356
          %1362 = vmatprep.subr.mxu0 0.0
          %1363 = vmatpush1.msra.mxu0 0.0
          %1364 = vmatprep.subr.mxu0 0.0
          %1365 = vmatpush1.msra.mxu0 0.0
          %1366 = vmatprep.subr.mxu0 0.0
          %1367 = vmatpush1.msra.mxu0 0.0
          %1368 = vmatprep.subr.mxu0 0.0
          %1369 = vmatpush1.msra.mxu0 0.0
          %1370 = vmatprep.subr.mxu0 0.0
          %1371 = vmatpush1.msra.mxu0 0.0
          %1372 = vmatprep.subr.mxu0 0.0
          %1373 = vmatpush1.msra.mxu0 0.0
          %1374 = vmatprep.subr.mxu0 0.0
          %1375 = vmatpush1.msra.mxu0 0.0
          %1376 = vmatprep.subr.mxu0 0.0
          %1377 = vmatpush1.msra.mxu0 0.0
          %1378 = vmatprep.subr.mxu0 0.0
          %1379 = vmatpush1.msra.mxu0 0.0
          %1380 = vmatprep.subr.mxu0 0.0
          %1381 = vmatpush1.msra.mxu0 0.0
          %1382 = vmatprep.subr.mxu0 0.0
          %1383 = vmatpush1.msra.mxu0 0.0
          %1384 = vmatprep.subr.mxu0 0.0
          %1385 = vmatpush1.msra.mxu0 0.0
          %1386 = vmatprep.subr.mxu0 0.0
          %1387 = vmatpush1.msra.mxu0 0.0
          %1388 = vmatprep.subr.mxu0 0.0
          %1389 = vmatpush1.msra.mxu0 0.0
          %1390 = vmatprep.subr.mxu0 0.0
          %1391 = vmatpush1.msra.mxu0 0.0
          %1392 = vmatprep.subr.mxu0 0.0
          %1393 = vmatpush1.msra.mxu0 0.0
          %1394 = vmatprep.subr.mxu0 0.0
          %1395 = vmatpush1.msra.mxu0 0.0
          %1396 = vmatprep.subr.mxu0 0.0
          %1397 = vmatpush1.msra.mxu0 0.0
          %1398 = vmatprep.subr.mxu0 0.0
          %1399 = vmatpush1.msra.mxu0 0.0
          %1400 = vmatprep.subr.mxu0 0.0
          %1401 = vmatpush1.msra.mxu0 0.0
          %1402 = vmatprep.subr.mxu0 0.0
          %1403 = vmatpush1.msra.mxu0 0.0
          %1404 = vmatprep.subr.mxu0 0.0
          %1405 = vmatpush1.msra.mxu0 0.0
          %1406 = vmatprep.subr.mxu0 0.0
          %1407 = vmatpush1.msra.mxu0 0.0
          %1408 = vmatprep.subr.mxu0 0.0
          %1409 = vmatpush1.msra.mxu0 0.0
          %1410 = vmatprep.subr.mxu0 0.0
          %1411 = vmatpush1.msra.mxu0 0.0
          %1412 = vmatprep.subr.mxu0 0.0
          %1413 = vmatpush1.msra.mxu0 0.0
          %1414 = vmatprep.subr.mxu0 0.0
          %1415 = vmatpush1.msra.mxu0 0.0
          %1416 = vmatprep.subr.mxu0 0.0
          %1417 = vmatpush1.msra.mxu0 0.0
          %1418 = vmatprep.subr.mxu0 0.0
          %1419 = vmatpush1.msra.mxu0 0.0
          %1420 = vmatprep.subr.mxu0 0.0
          %1421 = vmatpush1.msra.mxu0 0.0
          %1422 = vmatprep.mubr.f32.mxu0 0.0
          %1423 = vmatmul.mubr.f32.gmra.mrb[0].mxu0 %v1353
          %v1424 = vpop.f32.mrb[0].mxu0
          %v1425 = vadd.f32 %v1349, %v1424
          %v1426 = vpop.f32.mrb[0].mxu0
          %1427 = vdwg.mxu0
          %v1428 = vld [vmem:[%s7] sm:$0x1]
          %v1430 = vlaneseq
          %v1431 = vshrl.u32 %v1430, 7
          %v1432 = vsub.s32 0, %v1431
          %v1433 = vrot.slane %v1428, %v1432
          %v1435 = vadd.f32 %v1425, %v1433
          %v1436 = vmax.f32 %v1435, 0.0
          %v1437 = vld [vmem:[%s8] sm:$0xff]
          %v1438 = vld [vmem:[%s8 + $0x8] sm:$0xff]
          %v1439 = vld [vmem:[%s8 + $0x10] sm:$0xff]
          %v1440 = vld [vmem:[%s8 + $0x18] sm:$0xff]
          %v1441 = vld [vmem:[%s8 + $0x20] sm:$0xff]
          %v1442 = vld [vmem:[%s8 + $0x28] sm:$0xff]
          %v1443 = vld [vmem:[%s8 + $0x30] sm:$0xff]
          %v1444 = vld [vmem:[%s8 + $0x38] sm:$0xff]
          %v1445 = vld [vmem:[%s8 + $0x40] sm:$0xff]
          %v1446 = vld [vmem:[%s8 + $0x48] sm:$0xff]
          %v1447 = vld [vmem:[%s8 + $0x50] sm:$0xff]
          %v1448 = vld [vmem:[%s8 + $0x58] sm:$0xff]
          %v1449 = vld [vmem:[%s8 + $0x60] sm:$0xff]
          %v1450 = vld [vmem:[%s8 + $0x68] sm:$0xff]
          %v1451 = vld [vmem:[%s8 + $0x70] sm:$0xff]
          %v1452 = vld [vmem:[%s8 + $0x78] sm:$0xff]
          %v1453 = vld [vmem:[%s9] sm:$0x1]
          %v1455 = vlaneseq
          %v1456 = vshrl.u32 %v1455, 7
          %v1457 = vsub.s32 0, %v1456
          %v1458 = vrot.slane %v1453, %v1457
          %1460 = vmatprep.subr.mxu0 0.0
          %1461 = vmatpush1.msra.mxu0 %v1437
          %1462 = vmatprep.subr.mxu0 0.0
          %1463 = vmatpush1.msra.mxu0 %v1438
          %1464 = vmatprep.subr.mxu0 0.0
          %1465 = vmatpush1.msra.mxu0 %v1439
          %1466 = vmatprep.subr.mxu0 0.0
          %1467 = vmatpush1.msra.mxu0 %v1440
          %1468 = vmatprep.subr.mxu0 0.0
          %1469 = vmatpush1.msra.mxu0 %v1441
          %1470 = vmatprep.subr.mxu0 0.0
          %1471 = vmatpush1.msra.mxu0 %v1442
          %1472 = vmatprep.subr.mxu0 0.0
          %1473 = vmatpush1.msra.mxu0 %v1443
          %1474 = vmatprep.subr.mxu0 0.0
          %1475 = vmatpush1.msra.mxu0 %v1444
          %1476 = vmatprep.subr.mxu0 0.0
          %1477 = vmatpush1.msra.mxu0 %v1445
          %1478 = vmatprep.subr.mxu0 0.0
          %1479 = vmatpush1.msra.mxu0 %v1446
          %1480 = vmatprep.subr.mxu0 0.0
          %1481 = vmatpush1.msra.mxu0 %v1447
          %1482 = vmatprep.subr.mxu0 0.0
          %1483 = vmatpush1.msra.mxu0 %v1448
          %1484 = vmatprep.subr.mxu0 0.0
          %1485 = vmatpush1.msra.mxu0 %v1449
          %1486 = vmatprep.subr.mxu0 0.0
          %1487 = vmatpush1.msra.mxu0 %v1450
          %1488 = vmatprep.subr.mxu0 0.0
          %1489 = vmatpush1.msra.mxu0 %v1451
          %1490 = vmatprep.subr.mxu0 0.0
          %1491 = vmatpush1.msra.mxu0 %v1452
          %1492 = vmatprep.subr.mxu0 0.0
          %1493 = vmatpush1.msra.mxu0 0.0
          %1494 = vmatprep.subr.mxu0 0.0
          %1495 = vmatpush1.msra.mxu0 0.0
          %1496 = vmatprep.subr.mxu0 0.0
          %1497 = vmatpush1.msra.mxu0 0.0
          %1498 = vmatprep.subr.mxu0 0.0
          %1499 = vmatpush1.msra.mxu0 0.0
          %1500 = vmatprep.subr.mxu0 0.0
          %1501 = vmatpush1.msra.mxu0 0.0
          %1502 = vmatprep.subr.mxu0 0.0
          %1503 = vmatpush1.msra.mxu0 0.0
          %1504 = vmatprep.subr.mxu0 0.0
          %1505 = vmatpush1.msra.mxu0 0.0
          %1506 = vmatprep.subr.mxu0 0.0
          %1507 = vmatpush1.msra.mxu0 0.0
          %1508 = vmatprep.subr.mxu0 0.0
          %1509 = vmatpush1.msra.mxu0 0.0
          %1510 = vmatprep.subr.mxu0 0.0
          %1511 = vmatpush1.msra.mxu0 0.0
          %1512 = vmatprep.subr.mxu0 0.0
          %1513 = vmatpush1.msra.mxu0 0.0
          %1514 = vmatprep.subr.mxu0 0.0
          %1515 = vmatpush1.msra.mxu0 0.0
          %1516 = vmatprep.subr.mxu0 0.0
          %1517 = vmatpush1.msra.mxu0 0.0
          %1518 = vmatprep.subr.mxu0 0.0
          %1519 = vmatpush1.msra.mxu0 0.0
          %1520 = vmatprep.subr.mxu0 0.0
          %1521 = vmatpush1.msra.mxu0 0.0
          %1522 = vmatprep.subr.mxu0 0.0
          %1523 = vmatpush1.msra.mxu0 0.0
          %1524 = vmatprep.mubr.f32.mxu0 0.0
          %1525 = vmatmul.mubr.f32.gmra.mrb[0].mxu0 %v1436
          %v1526 = vpop.f32.mrb[0].mxu0
          %v1527 = vadd.f32 %v1458, %v1526
          %v1528 = vpop.f32.mrb[0].mxu0
          %1529 = vdwg.mxu0
          %vm1530 = vcmask 64512
          %v1531 = vsel %vm1530, %v1527, -inf
          %1532 = vmax.xlane.f32.xlu0 %v1531
          %v1533 = vpop.xlane.xlu0 %1532
          %v1534 = vsub.f32 %v1527, %v1533
          %v1535 = vmul.f32 %v1534, 1.442695
          %v1536 = vpow.pop %v1535
          %v1537 = vsel %vm1530, %v1536, 0.0
          %1538 = vadd.xlane.f32.xlu0 %v1537
          %v1539 = vpop.xlane.xlu0 %1538
          %v1540 = vrcp.pop %v1539
          %v1541 = vmul.f32 %v1536, %v1540
          %1542 = vst.msk [vmem:[#allocation3] sm:$0xff] %vm1530, %v1541
        $region68: #{tpu_custom_call.1} parent=59 // pred_fallthru
          _
        // Predicated region
        $region69: #{tpu_custom_call.1} parent=59 // pred_check
          %p1543 = pneg %p278
        $region70: #{tpu_custom_call.1} parent=59 // pred_check_branch
          %1545 = sbr.rel (%p1543) target = $region72
        $region71: #{tpu_custom_call.1} parent=59 // pred_region
          %s1547 = ssub.s32 128, 128
          %1548 = vsyncadd [#allocation4], %s1547
          %s1549 = smul.addr %s27, 128
          %s1550 = scalar_lea.hbm %s10, %s1549
          %s1552 = sshll.u32 [#allocation3], 4
          %s1553 = int_to_ptr.vmem [resolvable:$true] %s1552
          %1555 = dma.vmem_to_hbm [thread:$0]  %s1553, 128, %s1550, [#allocation4]
        $region72: #{tpu_custom_call.1} parent=59 // pred_fallthru
          _
        // Predicated region
        $region73: #{tpu_custom_call.1} parent=59 // pred_check
          %p1556 = pneg %p278
        $region74: #{tpu_custom_call.1} parent=59 // pred_check_branch
          %1558 = sbr.rel (%p1556) target = $region76
        $region75: #{tpu_custom_call.1} parent=59 // pred_region
          %1559 = dma.done [#allocation4], 128
        $region76: #{tpu_custom_call.1} parent=59 // pred_fallthru
          _
      $region60: #{tpu_custom_call.1} parent=5 // pred_fallthru
        _
      %p1560 = scmp.le.s32.totalorder 2, %s17
      // Predicated region
      $region77: #{tpu_custom_call.1} parent=5 // pred_check
        %p1561 = pneg %p1560
      $region78: #{tpu_custom_call.1} parent=5 // pred_check_branch
        %1563 = sbr.rel (%p1561) target = $region80
      $region79: #{tpu_custom_call.1} parent=5 // pred_region
        %s1564 = ssub.s32 %s17, 2
      $region80: #{tpu_custom_call.1} parent=5 // pred_fallthru
        _
    $region6: #{tpu_custom_call.1} parent=1 // loop_footer
      %s21 = sadd.s32 1, %s17
    $region7: #{tpu_custom_call.1} parent=1 // loop_footer_branch
      %16 = sbr.rel target = $region3
    $region8: #{tpu_custom_call.1} parent=1 // loop_exit
      _
    %1565 = vsyncpa [#allocation4], 1
    %s1566 = scalar_lea.sflag [#allocation4], 1
    %1567 = vsyncpa %s1566, 1

</llo_original>
